<compile_context>
chip_gen: v6e
topology: v6e:2x2x1
jax: 0.10.0
libtpu: 0.0.40
codegen_flags: <defaults>
</compile_context>

<pallas_src>
import functools
import math

import jax
import jax.numpy as jnp
from jax.experimental import pallas as pl
from jax.experimental.pallas import tpu as pltpu  # noqa: F401  (TPU backend)

# ---------------- model hyper-parameters (small, synthetic) ----------------
C_IN = 3                      # image channels
IMG = 16                      # image spatial size
PATCH = 8                     # patch size -> 2x2 = 4 patches
N_PATCH = (IMG // PATCH) ** 2
S_IMG = N_PATCH + 1           # + class token  (= 5)
S_PAD = 8                     # image sequence padded to one sublane tile
D = 32                        # transformer width
HEADS = 2
DH = D // HEADS
MLP = 4 * D
EMBED = 32                    # joint embedding dim
VOCAB = 64
SEQ_TXT = 8
LN_EPS = 1e-5
NEG_INF = -1e30
K_PATCH = C_IN * PATCH * PATCH


# --------------------------- in-kernel helpers -------------------------------
def _ln(x, g, b):
    """Row-wise LayerNorm over last dim.  x:[M,D] f32, g,b:[1,D]."""
    mu = jnp.mean(x, axis=-1, keepdims=True)
    xc = x - mu
    var = jnp.mean(xc * xc, axis=-1, keepdims=True)
    return xc * jax.lax.rsqrt(var + LN_EPS) * g + b


def _gelu(x):
    # tanh-approx GELU (EUP tanh)
    return 0.5 * x * (1.0 + jnp.tanh(0.7978845608028654 * (x + 0.044715 * x * x * x)))


def _attention(hn, wqkv_ref, bqkv_ref, wout_ref, attn_bias, *, batch, seq):
    """hn:[batch*seq, D] normalized hidden.  Returns out-projected attention
    (without out-proj bias).  Per-head weights are indexed off the leading ref
    axis, so only sublane-tile-aligned slices are used."""
    scale = 1.0 / math.sqrt(DH)
    att = [None] * batch
    for hh in range(HEADS):
        q_all = jnp.dot(hn, wqkv_ref[hh], preferred_element_type=jnp.float32) + bqkv_ref[hh]
        k_all = jnp.dot(hn, wqkv_ref[HEADS + hh], preferred_element_type=jnp.float32) + bqkv_ref[HEADS + hh]
        v_all = jnp.dot(hn, wqkv_ref[2 * HEADS + hh], preferred_element_type=jnp.float32) + bqkv_ref[2 * HEADS + hh]
        w_o = wout_ref[hh]                                         # [DH, D]
        for b in range(batch):
            sl = slice(b * seq, (b + 1) * seq)                     # tile-aligned
            q, k, v = q_all[sl], k_all[sl], v_all[sl]              # [seq, DH]
            s = jnp.dot(q, k.T, preferred_element_type=jnp.float32) * scale + attn_bias
            s = s - jnp.max(s, axis=-1, keepdims=True)
            p = jnp.exp(s)
            p = p * pl.reciprocal(jnp.sum(p, axis=-1, keepdims=True), approx=True)
            o = jnp.dot(p, v, preferred_element_type=jnp.float32)  # [seq, DH]
            c = jnp.dot(o, w_o, preferred_element_type=jnp.float32)  # [seq, D]
            att[b] = c if att[b] is None else att[b] + c
    return jnp.concatenate(att, axis=0)                            # [batch*seq, D]


def _block(x2, ln1_g, ln1_b, wqkv_ref, bqkv_ref, wout_ref, bout,
           ln2_g, ln2_b, fc1_w, fc1_b, fc2_w, fc2_b, attn_bias, *, batch, seq):
    """Pre-LN transformer block on x2:[batch*seq, D] (all f32 values)."""
    hn = _ln(x2, ln1_g, ln1_b)
    o = _attention(hn, wqkv_ref, bqkv_ref, wout_ref, attn_bias, batch=batch, seq=seq) + bout
    x2 = x2 + o
    h2 = _ln(x2, ln2_g, ln2_b)
    m = _gelu(jnp.dot(h2, fc1_w, preferred_element_type=jnp.float32) + fc1_b)
    m = jnp.dot(m, fc2_w, preferred_element_type=jnp.float32) + fc2_b
    return x2 + m


# ------------------------------ tower kernels --------------------------------
def _image_tower_kernel(patches_ref, pos_ref, patch_w_ref,
                        ln_pre_g_ref, ln_pre_b_ref,
                        ln1_g_ref, ln1_b_ref, wqkv_ref, bqkv_ref, wout_ref, bout_ref,
                        ln2_g_ref, ln2_b_ref, fc1_w_ref, fc1_b_ref, fc2_w_ref, fc2_b_ref,
                        ln_post_g_ref, ln_post_b_ref, proj_w_ref,
                        bias_ref, pool_ref, o_ref, *, batch, seq):
    # patch-embed conv (kernel=stride=patch) as matmul; cls token, positional
    # embedding and conv bias are pre-folded into pos_ref (additive term).
    x = jnp.dot(patches_ref[...].astype(jnp.float32), patch_w_ref[...],
                preferred_element_type=jnp.float32) + pos_ref[...]
    x = _ln(x, ln_pre_g_ref[...], ln_pre_b_ref[...])
    x = _block(x, ln1_g_ref[...], ln1_b_ref[...], wqkv_ref, bqkv_ref, wout_ref,
               bout_ref[...], ln2_g_ref[...], ln2_b_ref[...],
               fc1_w_ref[...], fc1_b_ref[...], fc2_w_ref[...], fc2_b_ref[...],
               bias_ref[...], batch=batch, seq=seq)
    pooled = jnp.dot(pool_ref[...], x, preferred_element_type=jnp.float32)   # cls rows
    pooled = _ln(pooled, ln_post_g_ref[...], ln_post_b_ref[...])
    o_ref[...] = jnp.dot(pooled, proj_w_ref[...],
                         preferred_element_type=jnp.float32).astype(o_ref.dtype)


def _text_tower_kernel(x_ref,
                       ln1_g_ref, ln1_b_ref, wqkv_ref, bqkv_ref, wout_ref, bout_ref,
                       ln2_g_ref, ln2_b_ref, fc1_w_ref, fc1_b_ref, fc2_w_ref, fc2_b_ref,
                       lnf_g_ref, lnf_b_ref, proj_w_ref,
                       bias_ref, pool_ref, o_ref, *, batch, seq):
    x = x_ref[...].astype(jnp.float32)
    x = _block(x, ln1_g_ref[...], ln1_b_ref[...], wqkv_ref, bqkv_ref, wout_ref,
               bout_ref[...], ln2_g_ref[...], ln2_b_ref[...],
               fc1_w_ref[...], fc1_b_ref[...], fc2_w_ref[...], fc2_b_ref[...],
               bias_ref[...], batch=batch, seq=seq)
    pooled = jnp.dot(pool_ref[...], x, preferred_element_type=jnp.float32)   # EOT rows
    pooled = _ln(pooled, lnf_g_ref[...], lnf_b_ref[...])
    o_ref[...] = jnp.dot(pooled, proj_w_ref[...],
                         preferred_element_type=jnp.float32).astype(o_ref.dtype)


# ------------------------------ host-side glue --------------------------------
def _split_heads(qkv_w, qkv_b, out_w):
    """qkv_w:[D,3D] -> [3*HEADS, D, DH]; qkv_b:[3D] -> [3*HEADS,1,DH];
    out_w:[D,D] -> [HEADS, DH, D].  (index = which*HEADS + head)"""
    wqkv = qkv_w.reshape(D, 3, HEADS, DH).transpose(1, 2, 0, 3).reshape(3 * HEADS, D, DH)
    bqkv = qkv_b.reshape(3 * HEADS, 1, DH)
    wout = out_w.reshape(HEADS, DH, D)
    return wqkv, bqkv, wout


def _r2(v):
    return v.reshape(1, -1)


def encode_image(params, image):
    """image: [B, C, H, W] (NCHW) -> [B, EMBED]; one fused pallas_call."""
    B, C, H, W = image.shape
    f32 = jnp.float32

    # im2col patchify of the stride-PATCH conv; pad to S_PAD tokens
    p_ = image.reshape(B, C, H // PATCH, PATCH, W // PATCH, PATCH)
    p_ = p_.transpose(0, 2, 4, 1, 3, 5).reshape(B, N_PATCH, K_PATCH)
    patches = jnp.zeros((B, S_PAD, K_PATCH), f32).at[:, 1:N_PATCH + 1, :].set(p_)
    patches = patches.reshape(B * S_PAD, K_PATCH)

    # cls token + positional embedding + conv bias folded into one additive term
    pos_plus = jnp.zeros((S_PAD, D), f32)
    pos_plus = pos_plus.at[0].set(params["v_cls"] + params["v_pos"][0])
    pos_plus = pos_plus.at[1:N_PATCH + 1].set(params["v_pos"][1:] + params["v_patch_b"][None, :])
    pos_full = jnp.tile(pos_plus, (B, 1))                                   # [B*S_PAD, D]

    # additive attention bias masking padded key positions
    col = jax.lax.broadcasted_iota(jnp.int32, (S_PAD, S_PAD), 1)
    attn_bias = jnp.where(col < S_IMG, 0.0, NEG_INF).astype(f32)

    # class-token pooling as a one-hot selection matmul
    pool = jax.nn.one_hot(jnp.arange(B) * S_PAD, B * S_PAD, dtype=f32)      # [B, B*S_PAD]

    wqkv, bqkv, wout = _split_heads(params["v_qkv_w"], params["v_qkv_b"], params["v_out_w"])

    kern = functools.partial(_image_tower_kernel, batch=B, seq=S_PAD)
    return pl.pallas_call(
        kern,
        out_shape=jax.ShapeDtypeStruct((B, EMBED), f32),
    )(patches, pos_full, params["v_patch_w"],
      _r2(params["v_ln_pre_g"]), _r2(params["v_ln_pre_b"]),
      _r2(params["v_ln1_g"]), _r2(params["v_ln1_b"]),
      wqkv, bqkv, wout, _r2(params["v_out_b"]),
      _r2(params["v_ln2_g"]), _r2(params["v_ln2_b"]),
      params["v_fc1_w"], _r2(params["v_fc1_b"]),
      params["v_fc2_w"], _r2(params["v_fc2_b"]),
      _r2(params["v_ln_post_g"]), _r2(params["v_ln_post_b"]),
      params["v_proj_w"], attn_bias, pool)


def encode_text(params, text):
    """text: [B, L] int32 token ids -> [B, EMBED]; one fused pallas_call."""
    B, L = text.shape
    f32 = jnp.float32

    x = params["t_tok"][text] + params["t_pos"][None]                       # gather = glue
    x = x.reshape(B * L, D).astype(f32)

    row = jax.lax.broadcasted_iota(jnp.int32, (L, L), 0)
    col = jax.lax.broadcasted_iota(jnp.int32, (L, L), 1)
    attn_bias = jnp.where(col <= row, 0.0, NEG_INF).astype(f32)             # causal

    eot = jnp.argmax(text, axis=-1)                                         # CLIP-style EOT pooling
    pool = jax.nn.one_hot(jnp.arange(B) * L + eot, B * L, dtype=f32)        # [B, B*L]

    wqkv, bqkv, wout = _split_heads(params["t_qkv_w"], params["t_qkv_b"], params["t_out_w"])

    kern = functools.partial(_text_tower_kernel, batch=B, seq=L)
    return pl.pallas_call(
        kern,
        out_shape=jax.ShapeDtypeStruct((B, EMBED), f32),
    )(x,
      _r2(params["t_ln1_g"]), _r2(params["t_ln1_b"]),
      wqkv, bqkv, wout, _r2(params["t_out_b"]),
      _r2(params["t_ln2_g"]), _r2(params["t_ln2_b"]),
      params["t_fc1_w"], _r2(params["t_fc1_b"]),
      params["t_fc2_w"], _r2(params["t_fc2_b"]),
      _r2(params["t_lnf_g"]), _r2(params["t_lnf_b"]),
      params["t_proj_w"], attn_bias, pool)


@jax.jit
def _eval_forward(params, image):
    return encode_image(params, image)


@jax.jit
def _train_forward(params, image, text):
    # two independent tower kernels inside one XLA program -> schedulable
    # concurrently (v7x: one per TensorCore).
    return encode_image(params, image), encode_text(params, text)


# ----------------------------- the wrapper ------------------------------------
class ClipWrapperPallas:
    """Pallas re-implementation of clip_wrapper.forward."""

    def __init__(self, params, training=False):
        self.params = params
        self.training = training

    def __call__(self, image, text=None):
        if not self.training:
            return _eval_forward(self.params, image)
        return _train_forward(self.params, image, text)


# --------------------------- deterministic init --------------------------------
def init_params(key):
    ks = iter(jax.random.split(key, 48))
    n = lambda shape, s=0.02: (s * jax.random.normal(next(ks), shape)).astype(jnp.float32)
    ones = lambda shape: jnp.ones(shape, jnp.float32)
    zeros = lambda shape: jnp.zeros(shape, jnp.float32)

    p = {}
    # ---- visual tower ----
    p["v_patch_w"] = n((K_PATCH, D))
    p["v_patch_b"] = zeros((D,))
    p["v_cls"] = n((D,))
    p["v_pos"] = n((S_IMG, D))
    p["v_ln_pre_g"], p["v_ln_pre_b"] = ones((D,)), zeros((D,))
    p["v_ln1_g"], p["v_ln1_b"] = ones((D,)), zeros((D,))
    p["v_qkv_w"], p["v_qkv_b"] = n((D, 3 * D)), zeros((3 * D,))
    p["v_out_w"], p["v_out_b"] = n((D, D)), zeros((D,))
    p["v_ln2_g"], p["v_ln2_b"] = ones((D,)), zeros((D,))
    p["v_fc1_w"], p["v_fc1_b"] = n((D, MLP)), zeros((MLP,))
    p["v_fc2_w"], p["v_fc2_b"] = n((MLP, D)), zeros((D,))
    p["v_ln_post_g"], p["v_ln_post_b"] = ones((D,)), zeros((D,))
    p["v_proj_w"] = n((D, EMBED))
    # ---- text tower ----
    p["t_tok"] = n((VOCAB, D))
    p["t_pos"] = n((SEQ_TXT, D))
    p["t_ln1_g"], p["t_ln1_b"] = ones((D,)), zeros((D,))
    p["t_qkv_w"], p["t_qkv_b"] = n((D, 3 * D)), zeros((3 * D,))
    p["t_out_w"], p["t_out_b"] = n((D, D)), zeros((D,))
    p["t_ln2_g"], p["t_ln2_b"] = ones((D,)), zeros((D,))
    p["t_fc1_w"], p["t_fc1_b"] = n((D, MLP)), zeros((MLP,))
    p["t_fc2_w"], p["t_fc2_b"] = n((MLP, D)), zeros((D,))
    p["t_lnf_g"], p["t_lnf_b"] = ones((D,)), zeros((D,))
    p["t_proj_w"] = n((D, EMBED))
    return p


# ----------------------------------- main --------------------------------------
if __name__ == "__main__":
    key = jax.random.PRNGKey(0)
    k_param, k_img, k_txt = jax.random.split(key, 3)

    params = init_params(k_param)
    image = jax.random.normal(k_img, (2, C_IN, IMG, IMG), dtype=jnp.float32)   # NCHW
    text = jax.random.randint(k_txt, (2, SEQ_TXT), 1, VOCAB, dtype=jnp.int32)

    # eval mode: image features only (matches `not self.training` branch)
    eval_model = ClipWrapperPallas(params, training=False)
    img_feats = jax.block_until_ready(eval_model(image))
    assert img_feats.shape == (2, EMBED)

    # training mode: (image_features, text_features)
    train_model = ClipWrapperPallas(params, training=True)
    img_feats_t, txt_feats_t = train_model(image, text)
    jax.block_until_ready((img_feats_t, txt_feats_t))
    assert img_feats_t.shape == (2, EMBED) and txt_feats_t.shape == (2, EMBED)

    print("KERNEL_OK")
</pallas_src>

<mosaic_0001>
module attributes {stable_mosaic.version = 11 : i64} {
  func.func @_image_tower_kernel(%arg0: memref<16x192xf32, #tpu.memory_space<vmem>>, %arg1: memref<16x32xf32, #tpu.memory_space<vmem>>, %arg2: memref<192x32xf32, #tpu.memory_space<vmem>>, %arg3: memref<1x32xf32, #tpu.memory_space<vmem>>, %arg4: memref<1x32xf32, #tpu.memory_space<vmem>>, %arg5: memref<1x32xf32, #tpu.memory_space<vmem>>, %arg6: memref<1x32xf32, #tpu.memory_space<vmem>>, %arg7: memref<6x32x16xf32, #tpu.memory_space<vmem>>, %arg8: memref<6x1x16xf32, #tpu.memory_space<vmem>>, %arg9: memref<2x16x32xf32, #tpu.memory_space<vmem>>, %arg10: memref<1x32xf32, #tpu.memory_space<vmem>>, %arg11: memref<1x32xf32, #tpu.memory_space<vmem>>, %arg12: memref<1x32xf32, #tpu.memory_space<vmem>>, %arg13: memref<32x128xf32, #tpu.memory_space<vmem>>, %arg14: memref<1x128xf32, #tpu.memory_space<vmem>>, %arg15: memref<128x32xf32, #tpu.memory_space<vmem>>, %arg16: memref<1x32xf32, #tpu.memory_space<vmem>>, %arg17: memref<1x32xf32, #tpu.memory_space<vmem>>, %arg18: memref<1x32xf32, #tpu.memory_space<vmem>>, %arg19: memref<32x32xf32, #tpu.memory_space<vmem>>, %arg20: memref<8x8xf32, #tpu.memory_space<vmem>>, %arg21: memref<2x16xf32, #tpu.memory_space<vmem>>, %arg22: memref<2x32xf32, #tpu.memory_space<vmem>>) attributes {dimension_semantics = [], scalar_prefetch = 0 : i64, scratch_operands = 0 : i64, tpu.core_type = #tpu.core_type<tc>} {
    %c0 = arith.constant 0 : index
    %c0_0 = arith.constant 0 : index
    %0 = vector.load %arg0[%c0, %c0_0] : memref<16x192xf32, #tpu.memory_space<vmem>>, vector<16x192xf32>
    %c0_1 = arith.constant 0 : index
    %c0_2 = arith.constant 0 : index
    %1 = vector.load %arg2[%c0_1, %c0_2] : memref<192x32xf32, #tpu.memory_space<vmem>>, vector<192x32xf32>
    %cst = arith.constant dense<0.000000e+00> : vector<16x32xf32>
    %2 = tpu.matmul %0, %1, %cst {dimension_numbers = #tpu.dot_dimension_numbers<[1], [0], [0], [1], [0, 0, 1, 1], [], []>} : vector<16x192xf32>, vector<192x32xf32>, vector<16x32xf32> -> vector<16x32xf32>
    %c0_3 = arith.constant 0 : index
    %c0_4 = arith.constant 0 : index
    %3 = vector.load %arg1[%c0_3, %c0_4] : memref<16x32xf32, #tpu.memory_space<vmem>>, vector<16x32xf32>
    %4 = arith.addf %2, %3 : vector<16x32xf32>
    %c0_5 = arith.constant 0 : index
    %c0_6 = arith.constant 0 : index
    %5 = vector.load %arg3[%c0_5, %c0_6] : memref<1x32xf32, #tpu.memory_space<vmem>>, vector<1x32xf32>
    %c0_7 = arith.constant 0 : index
    %c0_8 = arith.constant 0 : index
    %6 = vector.load %arg4[%c0_7, %c0_8] : memref<1x32xf32, #tpu.memory_space<vmem>>, vector<1x32xf32>
    %cst_9 = arith.constant dense<0.000000e+00> : vector<16xf32>
    %7 = vector.multi_reduction <add>, %4, %cst_9 [1] : vector<16x32xf32> to vector<16xf32>
    %8 = vector.shape_cast %7 : vector<16xf32> to vector<16x1xf32>
    %cst_10 = arith.constant 3.200000e+01 : f32
    %9 = vector.broadcast %cst_10 : f32 to vector<16x1xf32>
    %10 = arith.divf %8, %9 : vector<16x1xf32>
    %11 = vector.broadcast %10 : vector<16x1xf32> to vector<16x32xf32>
    %12 = arith.subf %4, %11 : vector<16x32xf32>
    %13 = arith.mulf %12, %12 : vector<16x32xf32>
    %cst_11 = arith.constant dense<0.000000e+00> : vector<16xf32>
    %14 = vector.multi_reduction <add>, %13, %cst_11 [1] : vector<16x32xf32> to vector<16xf32>
    %15 = vector.shape_cast %14 : vector<16xf32> to vector<16x1xf32>
    %cst_12 = arith.constant 3.200000e+01 : f32
    %16 = vector.broadcast %cst_12 : f32 to vector<16x1xf32>
    %17 = arith.divf %15, %16 : vector<16x1xf32>
    %cst_13 = arith.constant 9.99999974E-6 : f32
    %18 = vector.broadcast %cst_13 : f32 to vector<16x1xf32>
    %19 = arith.addf %17, %18 : vector<16x1xf32>
    %20 = math.rsqrt %19 : vector<16x1xf32>
    %21 = vector.broadcast %20 : vector<16x1xf32> to vector<16x32xf32>
    %22 = arith.mulf %12, %21 : vector<16x32xf32>
    %23 = vector.broadcast %5 : vector<1x32xf32> to vector<16x32xf32>
    %24 = arith.mulf %22, %23 : vector<16x32xf32>
    %25 = vector.broadcast %6 : vector<1x32xf32> to vector<16x32xf32>
    %26 = arith.addf %24, %25 : vector<16x32xf32>
    %c0_14 = arith.constant 0 : index
    %c0_15 = arith.constant 0 : index
    %27 = vector.load %arg5[%c0_14, %c0_15] : memref<1x32xf32, #tpu.memory_space<vmem>>, vector<1x32xf32>
    %c0_16 = arith.constant 0 : index
    %c0_17 = arith.constant 0 : index
    %28 = vector.load %arg6[%c0_16, %c0_17] : memref<1x32xf32, #tpu.memory_space<vmem>>, vector<1x32xf32>
    %c0_18 = arith.constant 0 : index
    %c0_19 = arith.constant 0 : index
    %29 = vector.load %arg10[%c0_18, %c0_19] : memref<1x32xf32, #tpu.memory_space<vmem>>, vector<1x32xf32>
    %c0_20 = arith.constant 0 : index
    %c0_21 = arith.constant 0 : index
    %30 = vector.load %arg11[%c0_20, %c0_21] : memref<1x32xf32, #tpu.memory_space<vmem>>, vector<1x32xf32>
    %c0_22 = arith.constant 0 : index
    %c0_23 = arith.constant 0 : index
    %31 = vector.load %arg12[%c0_22, %c0_23] : memref<1x32xf32, #tpu.memory_space<vmem>>, vector<1x32xf32>
    %c0_24 = arith.constant 0 : index
    %c0_25 = arith.constant 0 : index
    %32 = vector.load %arg13[%c0_24, %c0_25] : memref<32x128xf32, #tpu.memory_space<vmem>>, vector<32x128xf32>
    %c0_26 = arith.constant 0 : index
    %c0_27 = arith.constant 0 : index
    %33 = vector.load %arg14[%c0_26, %c0_27] : memref<1x128xf32, #tpu.memory_space<vmem>>, vector<1x128xf32>
    %c0_28 = arith.constant 0 : index
    %c0_29 = arith.constant 0 : index
    %34 = vector.load %arg15[%c0_28, %c0_29] : memref<128x32xf32, #tpu.memory_space<vmem>>, vector<128x32xf32>
    %c0_30 = arith.constant 0 : index
    %c0_31 = arith.constant 0 : index
    %35 = vector.load %arg16[%c0_30, %c0_31] : memref<1x32xf32, #tpu.memory_space<vmem>>, vector<1x32xf32>
    %c0_32 = arith.constant 0 : index
    %c0_33 = arith.constant 0 : index
    %36 = vector.load %arg20[%c0_32, %c0_33] : memref<8x8xf32, #tpu.memory_space<vmem>>, vector<8x8xf32>
    %cst_34 = arith.constant dense<0.000000e+00> : vector<16xf32>
    %37 = vector.multi_reduction <add>, %26, %cst_34 [1] : vector<16x32xf32> to vector<16xf32>
    %38 = vector.shape_cast %37 : vector<16xf32> to vector<16x1xf32>
    %cst_35 = arith.constant 3.200000e+01 : f32
    %39 = vector.broadcast %cst_35 : f32 to vector<16x1xf32>
    %40 = arith.divf %38, %39 : vector<16x1xf32>
    %41 = vector.broadcast %40 : vector<16x1xf32> to vector<16x32xf32>
    %42 = arith.subf %26, %41 : vector<16x32xf32>
    %43 = arith.mulf %42, %42 : vector<16x32xf32>
    %cst_36 = arith.constant dense<0.000000e+00> : vector<16xf32>
    %44 = vector.multi_reduction <add>, %43, %cst_36 [1] : vector<16x32xf32> to vector<16xf32>
    %45 = vector.shape_cast %44 : vector<16xf32> to vector<16x1xf32>
    %cst_37 = arith.constant 3.200000e+01 : f32
    %46 = vector.broadcast %cst_37 : f32 to vector<16x1xf32>
    %47 = arith.divf %45, %46 : vector<16x1xf32>
    %cst_38 = arith.constant 9.99999974E-6 : f32
    %48 = vector.broadcast %cst_38 : f32 to vector<16x1xf32>
    %49 = arith.addf %47, %48 : vector<16x1xf32>
    %50 = math.rsqrt %49 : vector<16x1xf32>
    %51 = vector.broadcast %50 : vector<16x1xf32> to vector<16x32xf32>
    %52 = arith.mulf %42, %51 : vector<16x32xf32>
    %53 = vector.broadcast %27 : vector<1x32xf32> to vector<16x32xf32>
    %54 = arith.mulf %52, %53 : vector<16x32xf32>
    %55 = vector.broadcast %28 : vector<1x32xf32> to vector<16x32xf32>
    %56 = arith.addf %54, %55 : vector<16x32xf32>
    %c0_39 = arith.constant 0 : index
    %c0_40 = arith.constant 0 : index
    %c0_41 = arith.constant 0 : index
    %57 = vector.load %arg7[%c0_39, %c0_40, %c0_41] : memref<6x32x16xf32, #tpu.memory_space<vmem>>, vector<1x32x16xf32>
    %58 = vector.shape_cast %57 : vector<1x32x16xf32> to vector<32x16xf32>
    %cst_42 = arith.constant dense<0.000000e+00> : vector<16x16xf32>
    %59 = tpu.matmul %56, %58, %cst_42 {dimension_numbers = #tpu.dot_dimension_numbers<[1], [0], [0], [1], [0, 0, 1, 1], [], []>} : vector<16x32xf32>, vector<32x16xf32>, vector<16x16xf32> -> vector<16x16xf32>
    %c0_43 = arith.constant 0 : index
    %c0_44 = arith.constant 0 : index
    %c0_45 = arith.constant 0 : index
    %60 = vector.load %arg8[%c0_43, %c0_44, %c0_45] : memref<6x1x16xf32, #tpu.memory_space<vmem>>, vector<1x1x16xf32>
    %61 = vector.shape_cast %60 : vector<1x1x16xf32> to vector<1x16xf32>
    %62 = vector.broadcast %61 : vector<1x16xf32> to vector<16x16xf32>
    %63 = arith.addf %59, %62 : vector<16x16xf32>
    %c2 = arith.constant 2 : index
    %c0_46 = arith.constant 0 : index
    %c0_47 = arith.constant 0 : index
    %64 = vector.load %arg7[%c2, %c0_46, %c0_47] : memref<6x32x16xf32, #tpu.memory_space<vmem>>, vector<1x32x16xf32>
    %65 = vector.shape_cast %64 : vector<1x32x16xf32> to vector<32x16xf32>
    %cst_48 = arith.constant dense<0.000000e+00> : vector<16x16xf32>
    %66 = tpu.matmul %56, %65, %cst_48 {dimension_numbers = #tpu.dot_dimension_numbers<[1], [0], [0], [1], [0, 0, 1, 1], [], []>} : vector<16x32xf32>, vector<32x16xf32>, vector<16x16xf32> -> vector<16x16xf32>
    %c2_49 = arith.constant 2 : index
    %c0_50 = arith.constant 0 : index
    %c0_51 = arith.constant 0 : index
    %67 = vector.load %arg8[%c2_49, %c0_50, %c0_51] : memref<6x1x16xf32, #tpu.memory_space<vmem>>, vector<1x1x16xf32>
    %68 = vector.shape_cast %67 : vector<1x1x16xf32> to vector<1x16xf32>
    %69 = vector.broadcast %68 : vector<1x16xf32> to vector<16x16xf32>
    %70 = arith.addf %66, %69 : vector<16x16xf32>
    %c4 = arith.constant 4 : index
    %c0_52 = arith.constant 0 : index
    %c0_53 = arith.constant 0 : index
    %71 = vector.load %arg7[%c4, %c0_52, %c0_53] : memref<6x32x16xf32, #tpu.memory_space<vmem>>, vector<1x32x16xf32>
    %72 = vector.shape_cast %71 : vector<1x32x16xf32> to vector<32x16xf32>
    %cst_54 = arith.constant dense<0.000000e+00> : vector<16x16xf32>
    %73 = tpu.matmul %56, %72, %cst_54 {dimension_numbers = #tpu.dot_dimension_numbers<[1], [0], [0], [1], [0, 0, 1, 1], [], []>} : vector<16x32xf32>, vector<32x16xf32>, vector<16x16xf32> -> vector<16x16xf32>
    %c4_55 = arith.constant 4 : index
    %c0_56 = arith.constant 0 : index
    %c0_57 = arith.constant 0 : index
    %74 = vector.load %arg8[%c4_55, %c0_56, %c0_57] : memref<6x1x16xf32, #tpu.memory_space<vmem>>, vector<1x1x16xf32>
    %75 = vector.shape_cast %74 : vector<1x1x16xf32> to vector<1x16xf32>
    %76 = vector.broadcast %75 : vector<1x16xf32> to vector<16x16xf32>
    %77 = arith.addf %73, %76 : vector<16x16xf32>
    %c0_58 = arith.constant 0 : index
    %c0_59 = arith.constant 0 : index
    %c0_60 = arith.constant 0 : index
    %78 = vector.load %arg9[%c0_58, %c0_59, %c0_60] : memref<2x16x32xf32, #tpu.memory_space<vmem>>, vector<1x16x32xf32>
    %79 = vector.shape_cast %78 : vector<1x16x32xf32> to vector<16x32xf32>
    %80 = vector.extract_strided_slice %63 {offsets = [0, 0], sizes = [8, 16], strides = [1, 1]} : vector<16x16xf32> to vector<8x16xf32>
    %81 = vector.extract_strided_slice %70 {offsets = [0, 0], sizes = [8, 16], strides = [1, 1]} : vector<16x16xf32> to vector<8x16xf32>
    %82 = vector.extract_strided_slice %77 {offsets = [0, 0], sizes = [8, 16], strides = [1, 1]} : vector<16x16xf32> to vector<8x16xf32>
    %83 = tpu.transpose %81, [1, 0] : vector<8x16xf32> -> vector<16x8xf32>
    %cst_61 = arith.constant dense<0.000000e+00> : vector<8x8xf32>
    %84 = tpu.matmul %80, %83, %cst_61 {dimension_numbers = #tpu.dot_dimension_numbers<[1], [0], [0], [1], [0, 0, 1, 1], [], []>} : vector<8x16xf32>, vector<16x8xf32>, vector<8x8xf32> -> vector<8x8xf32>
    %cst_62 = arith.constant 2.500000e-01 : f32
    %85 = vector.broadcast %cst_62 : f32 to vector<8x8xf32>
    %86 = arith.mulf %84, %85 : vector<8x8xf32>
    %87 = arith.addf %86, %36 : vector<8x8xf32>
    %cst_63 = arith.constant dense<0xFF800000> : vector<8xf32>
    %88 = vector.multi_reduction <maximumf>, %87, %cst_63 [1] : vector<8x8xf32> to vector<8xf32>
    %89 = vector.shape_cast %88 : vector<8xf32> to vector<8x1xf32>
    %90 = vector.broadcast %89 : vector<8x1xf32> to vector<8x8xf32>
    %91 = arith.subf %87, %90 : vector<8x8xf32>
    %92 = math.exp %91 : vector<8x8xf32>
    %cst_64 = arith.constant dense<0.000000e+00> : vector<8xf32>
    %93 = vector.multi_reduction <add>, %92, %cst_64 [1] : vector<8x8xf32> to vector<8xf32>
    %94 = vector.shape_cast %93 : vector<8xf32> to vector<8x1xf32>
    %95 = tpu.reciprocal %94 {approx = true} : vector<8x1xf32> -> vector<8x1xf32>
    %96 = vector.broadcast %95 : vector<8x1xf32> to vector<8x8xf32>
    %97 = arith.mulf %92, %96 : vector<8x8xf32>
    %cst_65 = arith.constant dense<0.000000e+00> : vector<8x16xf32>
    %98 = tpu.matmul %97, %82, %cst_65 {dimension_numbers = #tpu.dot_dimension_numbers<[1], [0], [0], [1], [0, 0, 1, 1], [], []>} : vector<8x8xf32>, vector<8x16xf32>, vector<8x16xf32> -> vector<8x16xf32>
    %cst_66 = arith.constant dense<0.000000e+00> : vector<8x32xf32>
    %99 = tpu.matmul %98, %79, %cst_66 {dimension_numbers = #tpu.dot_dimension_numbers<[1], [0], [0], [1], [0, 0, 1, 1], [], []>} : vector<8x16xf32>, vector<16x32xf32>, vector<8x32xf32> -> vector<8x32xf32>
    %100 = vector.extract_strided_slice %63 {offsets = [8, 0], sizes = [8, 16], strides = [1, 1]} : vector<16x16xf32> to vector<8x16xf32>
    %101 = vector.extract_strided_slice %70 {offsets = [8, 0], sizes = [8, 16], strides = [1, 1]} : vector<16x16xf32> to vector<8x16xf32>
    %102 = vector.extract_strided_slice %77 {offsets = [8, 0], sizes = [8, 16], strides = [1, 1]} : vector<16x16xf32> to vector<8x16xf32>
    %103 = tpu.transpose %101, [1, 0] : vector<8x16xf32> -> vector<16x8xf32>
    %cst_67 = arith.constant dense<0.000000e+00> : vector<8x8xf32>
    %104 = tpu.matmul %100, %103, %cst_67 {dimension_numbers = #tpu.dot_dimension_numbers<[1], [0], [0], [1], [0, 0, 1, 1], [], []>} : vector<8x16xf32>, vector<16x8xf32>, vector<8x8xf32> -> vector<8x8xf32>
    %cst_68 = arith.constant 2.500000e-01 : f32
    %105 = vector.broadcast %cst_68 : f32 to vector<8x8xf32>
    %106 = arith.mulf %104, %105 : vector<8x8xf32>
    %107 = arith.addf %106, %36 : vector<8x8xf32>
    %cst_69 = arith.constant dense<0xFF800000> : vector<8xf32>
    %108 = vector.multi_reduction <maximumf>, %107, %cst_69 [1] : vector<8x8xf32> to vector<8xf32>
    %109 = vector.shape_cast %108 : vector<8xf32> to vector<8x1xf32>
    %110 = vector.broadcast %109 : vector<8x1xf32> to vector<8x8xf32>
    %111 = arith.subf %107, %110 : vector<8x8xf32>
    %112 = math.exp %111 : vector<8x8xf32>
    %cst_70 = arith.constant dense<0.000000e+00> : vector<8xf32>
    %113 = vector.multi_reduction <add>, %112, %cst_70 [1] : vector<8x8xf32> to vector<8xf32>
    %114 = vector.shape_cast %113 : vector<8xf32> to vector<8x1xf32>
    %115 = tpu.reciprocal %114 {approx = true} : vector<8x1xf32> -> vector<8x1xf32>
    %116 = vector.broadcast %115 : vector<8x1xf32> to vector<8x8xf32>
    %117 = arith.mulf %112, %116 : vector<8x8xf32>
    %cst_71 = arith.constant dense<0.000000e+00> : vector<8x16xf32>
    %118 = tpu.matmul %117, %102, %cst_71 {dimension_numbers = #tpu.dot_dimension_numbers<[1], [0], [0], [1], [0, 0, 1, 1], [], []>} : vector<8x8xf32>, vector<8x16xf32>, vector<8x16xf32> -> vector<8x16xf32>
    %cst_72 = arith.constant dense<0.000000e+00> : vector<8x32xf32>
    %119 = tpu.matmul %118, %79, %cst_72 {dimension_numbers = #tpu.dot_dimension_numbers<[1], [0], [0], [1], [0, 0, 1, 1], [], []>} : vector<8x16xf32>, vector<16x32xf32>, vector<8x32xf32> -> vector<8x32xf32>
    %c1 = arith.constant 1 : index
    %c0_73 = arith.constant 0 : index
    %c0_74 = arith.constant 0 : index
    %120 = vector.load %arg7[%c1, %c0_73, %c0_74] : memref<6x32x16xf32, #tpu.memory_space<vmem>>, vector<1x32x16xf32>
    %121 = vector.shape_cast %120 : vector<1x32x16xf32> to vector<32x16xf32>
    %cst_75 = arith.constant dense<0.000000e+00> : vector<16x16xf32>
    %122 = tpu.matmul %56, %121, %cst_75 {dimension_numbers = #tpu.dot_dimension_numbers<[1], [0], [0], [1], [0, 0, 1, 1], [], []>} : vector<16x32xf32>, vector<32x16xf32>, vector<16x16xf32> -> vector<16x16xf32>
    %c1_76 = arith.constant 1 : index
    %c0_77 = arith.constant 0 : index
    %c0_78 = arith.constant 0 : index
    %123 = vector.load %arg8[%c1_76, %c0_77, %c0_78] : memref<6x1x16xf32, #tpu.memory_space<vmem>>, vector<1x1x16xf32>
    %124 = vector.shape_cast %123 : vector<1x1x16xf32> to vector<1x16xf32>
    %125 = vector.broadcast %124 : vector<1x16xf32> to vector<16x16xf32>
    %126 = arith.addf %122, %125 : vector<16x16xf32>
    %c3 = arith.constant 3 : index
    %c0_79 = arith.constant 0 : index
    %c0_80 = arith.constant 0 : index
    %127 = vector.load %arg7[%c3, %c0_79, %c0_80] : memref<6x32x16xf32, #tpu.memory_space<vmem>>, vector<1x32x16xf32>
    %128 = vector.shape_cast %127 : vector<1x32x16xf32> to vector<32x16xf32>
    %cst_81 = arith.constant dense<0.000000e+00> : vector<16x16xf32>
    %129 = tpu.matmul %56, %128, %cst_81 {dimension_numbers = #tpu.dot_dimension_numbers<[1], [0], [0], [1], [0, 0, 1, 1], [], []>} : vector<16x32xf32>, vector<32x16xf32>, vector<16x16xf32> -> vector<16x16xf32>
    %c3_82 = arith.constant 3 : index
    %c0_83 = arith.constant 0 : index
    %c0_84 = arith.constant 0 : index
    %130 = vector.load %arg8[%c3_82, %c0_83, %c0_84] : memref<6x1x16xf32, #tpu.memory_space<vmem>>, vector<1x1x16xf32>
    %131 = vector.shape_cast %130 : vector<1x1x16xf32> to vector<1x16xf32>
    %132 = vector.broadcast %131 : vector<1x16xf32> to vector<16x16xf32>
    %133 = arith.addf %129, %132 : vector<16x16xf32>
    %c5 = arith.constant 5 : index
    %c0_85 = arith.constant 0 : index
    %c0_86 = arith.constant 0 : index
    %134 = vector.load %arg7[%c5, %c0_85, %c0_86] : memref<6x32x16xf32, #tpu.memory_space<vmem>>, vector<1x32x16xf32>
    %135 = vector.shape_cast %134 : vector<1x32x16xf32> to vector<32x16xf32>
    %cst_87 = arith.constant dense<0.000000e+00> : vector<16x16xf32>
    %136 = tpu.matmul %56, %135, %cst_87 {dimension_numbers = #tpu.dot_dimension_numbers<[1], [0], [0], [1], [0, 0, 1, 1], [], []>} : vector<16x32xf32>, vector<32x16xf32>, vector<16x16xf32> -> vector<16x16xf32>
    %c5_88 = arith.constant 5 : index
    %c0_89 = arith.constant 0 : index
    %c0_90 = arith.constant 0 : index
    %137 = vector.load %arg8[%c5_88, %c0_89, %c0_90] : memref<6x1x16xf32, #tpu.memory_space<vmem>>, vector<1x1x16xf32>
    %138 = vector.shape_cast %137 : vector<1x1x16xf32> to vector<1x16xf32>
    %139 = vector.broadcast %138 : vector<1x16xf32> to vector<16x16xf32>
    %140 = arith.addf %136, %139 : vector<16x16xf32>
    %c1_91 = arith.constant 1 : index
    %c0_92 = arith.constant 0 : index
    %c0_93 = arith.constant 0 : index
    %141 = vector.load %arg9[%c1_91, %c0_92, %c0_93] : memref<2x16x32xf32, #tpu.memory_space<vmem>>, vector<1x16x32xf32>
    %142 = vector.shape_cast %141 : vector<1x16x32xf32> to vector<16x32xf32>
    %143 = vector.extract_strided_slice %126 {offsets = [0, 0], sizes = [8, 16], strides = [1, 1]} : vector<16x16xf32> to vector<8x16xf32>
    %144 = vector.extract_strided_slice %133 {offsets = [0, 0], sizes = [8, 16], strides = [1, 1]} : vector<16x16xf32> to vector<8x16xf32>
    %145 = vector.extract_strided_slice %140 {offsets = [0, 0], sizes = [8, 16], strides = [1, 1]} : vector<16x16xf32> to vector<8x16xf32>
    %146 = tpu.transpose %144, [1, 0] : vector<8x16xf32> -> vector<16x8xf32>
    %cst_94 = arith.constant dense<0.000000e+00> : vector<8x8xf32>
    %147 = tpu.matmul %143, %146, %cst_94 {dimension_numbers = #tpu.dot_dimension_numbers<[1], [0], [0], [1], [0, 0, 1, 1], [], []>} : vector<8x16xf32>, vector<16x8xf32>, vector<8x8xf32> -> vector<8x8xf32>
    %cst_95 = arith.constant 2.500000e-01 : f32
    %148 = vector.broadcast %cst_95 : f32 to vector<8x8xf32>
    %149 = arith.mulf %147, %148 : vector<8x8xf32>
    %150 = arith.addf %149, %36 : vector<8x8xf32>
    %cst_96 = arith.constant dense<0xFF800000> : vector<8xf32>
    %151 = vector.multi_reduction <maximumf>, %150, %cst_96 [1] : vector<8x8xf32> to vector<8xf32>
    %152 = vector.shape_cast %151 : vector<8xf32> to vector<8x1xf32>
    %153 = vector.broadcast %152 : vector<8x1xf32> to vector<8x8xf32>
    %154 = arith.subf %150, %153 : vector<8x8xf32>
    %155 = math.exp %154 : vector<8x8xf32>
    %cst_97 = arith.constant dense<0.000000e+00> : vector<8xf32>
    %156 = vector.multi_reduction <add>, %155, %cst_97 [1] : vector<8x8xf32> to vector<8xf32>
    %157 = vector.shape_cast %156 : vector<8xf32> to vector<8x1xf32>
    %158 = tpu.reciprocal %157 {approx = true} : vector<8x1xf32> -> vector<8x1xf32>
    %159 = vector.broadcast %158 : vector<8x1xf32> to vector<8x8xf32>
    %160 = arith.mulf %155, %159 : vector<8x8xf32>
    %cst_98 = arith.constant dense<0.000000e+00> : vector<8x16xf32>
    %161 = tpu.matmul %160, %145, %cst_98 {dimension_numbers = #tpu.dot_dimension_numbers<[1], [0], [0], [1], [0, 0, 1, 1], [], []>} : vector<8x8xf32>, vector<8x16xf32>, vector<8x16xf32> -> vector<8x16xf32>
    %cst_99 = arith.constant dense<0.000000e+00> : vector<8x32xf32>
    %162 = tpu.matmul %161, %142, %cst_99 {dimension_numbers = #tpu.dot_dimension_numbers<[1], [0], [0], [1], [0, 0, 1, 1], [], []>} : vector<8x16xf32>, vector<16x32xf32>, vector<8x32xf32> -> vector<8x32xf32>
    %163 = arith.addf %99, %162 : vector<8x32xf32>
    %164 = vector.extract_strided_slice %126 {offsets = [8, 0], sizes = [8, 16], strides = [1, 1]} : vector<16x16xf32> to vector<8x16xf32>
    %165 = vector.extract_strided_slice %133 {offsets = [8, 0], sizes = [8, 16], strides = [1, 1]} : vector<16x16xf32> to vector<8x16xf32>
    %166 = vector.extract_strided_slice %140 {offsets = [8, 0], sizes = [8, 16], strides = [1, 1]} : vector<16x16xf32> to vector<8x16xf32>
    %167 = tpu.transpose %165, [1, 0] : vector<8x16xf32> -> vector<16x8xf32>
    %cst_100 = arith.constant dense<0.000000e+00> : vector<8x8xf32>
    %168 = tpu.matmul %164, %167, %cst_100 {dimension_numbers = #tpu.dot_dimension_numbers<[1], [0], [0], [1], [0, 0, 1, 1], [], []>} : vector<8x16xf32>, vector<16x8xf32>, vector<8x8xf32> -> vector<8x8xf32>
    %cst_101 = arith.constant 2.500000e-01 : f32
    %169 = vector.broadcast %cst_101 : f32 to vector<8x8xf32>
    %170 = arith.mulf %168, %169 : vector<8x8xf32>
    %171 = arith.addf %170, %36 : vector<8x8xf32>
    %cst_102 = arith.constant dense<0xFF800000> : vector<8xf32>
    %172 = vector.multi_reduction <maximumf>, %171, %cst_102 [1] : vector<8x8xf32> to vector<8xf32>
    %173 = vector.shape_cast %172 : vector<8xf32> to vector<8x1xf32>
    %174 = vector.broadcast %173 : vector<8x1xf32> to vector<8x8xf32>
    %175 = arith.subf %171, %174 : vector<8x8xf32>
    %176 = math.exp %175 : vector<8x8xf32>
    %cst_103 = arith.constant dense<0.000000e+00> : vector<8xf32>
    %177 = vector.multi_reduction <add>, %176, %cst_103 [1] : vector<8x8xf32> to vector<8xf32>
    %178 = vector.shape_cast %177 : vector<8xf32> to vector<8x1xf32>
    %179 = tpu.reciprocal %178 {approx = true} : vector<8x1xf32> -> vector<8x1xf32>
    %180 = vector.broadcast %179 : vector<8x1xf32> to vector<8x8xf32>
    %181 = arith.mulf %176, %180 : vector<8x8xf32>
    %cst_104 = arith.constant dense<0.000000e+00> : vector<8x16xf32>
    %182 = tpu.matmul %181, %166, %cst_104 {dimension_numbers = #tpu.dot_dimension_numbers<[1], [0], [0], [1], [0, 0, 1, 1], [], []>} : vector<8x8xf32>, vector<8x16xf32>, vector<8x16xf32> -> vector<8x16xf32>
    %cst_105 = arith.constant dense<0.000000e+00> : vector<8x32xf32>
    %183 = tpu.matmul %182, %142, %cst_105 {dimension_numbers = #tpu.dot_dimension_numbers<[1], [0], [0], [1], [0, 0, 1, 1], [], []>} : vector<8x16xf32>, vector<16x32xf32>, vector<8x32xf32> -> vector<8x32xf32>
    %184 = arith.addf %119, %183 : vector<8x32xf32>
    %185 = tpu.concatenate %163, %184 in 0 : vector<8x32xf32>, vector<8x32xf32> -> vector<16x32xf32>
    %186 = vector.broadcast %29 : vector<1x32xf32> to vector<16x32xf32>
    %187 = arith.addf %185, %186 : vector<16x32xf32>
    %188 = arith.addf %26, %187 : vector<16x32xf32>
    %cst_106 = arith.constant dense<0.000000e+00> : vector<16xf32>
    %189 = vector.multi_reduction <add>, %188, %cst_106 [1] : vector<16x32xf32> to vector<16xf32>
    %190 = vector.shape_cast %189 : vector<16xf32> to vector<16x1xf32>
    %cst_107 = arith.constant 3.200000e+01 : f32
    %191 = vector.broadcast %cst_107 : f32 to vector<16x1xf32>
    %192 = arith.divf %190, %191 : vector<16x1xf32>
    %193 = vector.broadcast %192 : vector<16x1xf32> to vector<16x32xf32>
    %194 = arith.subf %188, %193 : vector<16x32xf32>
    %195 = arith.mulf %194, %194 : vector<16x32xf32>
    %cst_108 = arith.constant dense<0.000000e+00> : vector<16xf32>
    %196 = vector.multi_reduction <add>, %195, %cst_108 [1] : vector<16x32xf32> to vector<16xf32>
    %197 = vector.shape_cast %196 : vector<16xf32> to vector<16x1xf32>
    %cst_109 = arith.constant 3.200000e+01 : f32
    %198 = vector.broadcast %cst_109 : f32 to vector<16x1xf32>
    %199 = arith.divf %197, %198 : vector<16x1xf32>
    %cst_110 = arith.constant 9.99999974E-6 : f32
    %200 = vector.broadcast %cst_110 : f32 to vector<16x1xf32>
    %201 = arith.addf %199, %200 : vector<16x1xf32>
    %202 = math.rsqrt %201 : vector<16x1xf32>
    %203 = vector.broadcast %202 : vector<16x1xf32> to vector<16x32xf32>
    %204 = arith.mulf %194, %203 : vector<16x32xf32>
    %205 = vector.broadcast %30 : vector<1x32xf32> to vector<16x32xf32>
    %206 = arith.mulf %204, %205 : vector<16x32xf32>
    %207 = vector.broadcast %31 : vector<1x32xf32> to vector<16x32xf32>
    %208 = arith.addf %206, %207 : vector<16x32xf32>
    %cst_111 = arith.constant dense<0.000000e+00> : vector<16x128xf32>
    %209 = tpu.matmul %208, %32, %cst_111 {dimension_numbers = #tpu.dot_dimension_numbers<[1], [0], [0], [1], [0, 0, 1, 1], [], []>} : vector<16x32xf32>, vector<32x128xf32>, vector<16x128xf32> -> vector<16x128xf32>
    %210 = vector.broadcast %33 : vector<1x128xf32> to vector<16x128xf32>
    %211 = arith.addf %209, %210 : vector<16x128xf32>
    %cst_112 = arith.constant 5.000000e-01 : f32
    %212 = vector.broadcast %cst_112 : f32 to vector<16x128xf32>
    %213 = arith.mulf %212, %211 : vector<16x128xf32>
    %cst_113 = arith.constant 4.471500e-02 : f32
    %214 = vector.broadcast %cst_113 : f32 to vector<16x128xf32>
    %215 = arith.mulf %214, %211 : vector<16x128xf32>
    %216 = arith.mulf %215, %211 : vector<16x128xf32>
    %217 = arith.mulf %216, %211 : vector<16x128xf32>
    %218 = arith.addf %211, %217 : vector<16x128xf32>
    %cst_114 = arith.constant 0.797884583 : f32
    %219 = vector.broadcast %cst_114 : f32 to vector<16x128xf32>
    %220 = arith.mulf %219, %218 : vector<16x128xf32>
    %221 = math.tanh %220 : vector<16x128xf32>
    %cst_115 = arith.constant 1.000000e+00 : f32
    %222 = vector.broadcast %cst_115 : f32 to vector<16x128xf32>
    %223 = arith.addf %222, %221 : vector<16x128xf32>
    %224 = arith.mulf %213, %223 : vector<16x128xf32>
    %cst_116 = arith.constant dense<0.000000e+00> : vector<16x32xf32>
    %225 = tpu.matmul %224, %34, %cst_116 {dimension_numbers = #tpu.dot_dimension_numbers<[1], [0], [0], [1], [0, 0, 1, 1], [], []>} : vector<16x128xf32>, vector<128x32xf32>, vector<16x32xf32> -> vector<16x32xf32>
    %226 = vector.broadcast %35 : vector<1x32xf32> to vector<16x32xf32>
    %227 = arith.addf %225, %226 : vector<16x32xf32>
    %228 = arith.addf %188, %227 : vector<16x32xf32>
    %c0_117 = arith.constant 0 : index
    %c0_118 = arith.constant 0 : index
    %229 = vector.load %arg21[%c0_117, %c0_118] : memref<2x16xf32, #tpu.memory_space<vmem>>, vector<2x16xf32>
    %cst_119 = arith.constant dense<0.000000e+00> : vector<2x32xf32>
    %230 = tpu.matmul %229, %228, %cst_119 {dimension_numbers = #tpu.dot_dimension_numbers<[1], [0], [0], [1], [0, 0, 1, 1], [], []>} : vector<2x16xf32>, vector<16x32xf32>, vector<2x32xf32> -> vector<2x32xf32>
    %c0_120 = arith.constant 0 : index
    %c0_121 = arith.constant 0 : index
    %231 = vector.load %arg17[%c0_120, %c0_121] : memref<1x32xf32, #tpu.memory_space<vmem>>, vector<1x32xf32>
    %c0_122 = arith.constant 0 : index
    %c0_123 = arith.constant 0 : index
    %232 = vector.load %arg18[%c0_122, %c0_123] : memref<1x32xf32, #tpu.memory_space<vmem>>, vector<1x32xf32>
    %cst_124 = arith.constant dense<0.000000e+00> : vector<2xf32>
    %233 = vector.multi_reduction <add>, %230, %cst_124 [1] : vector<2x32xf32> to vector<2xf32>
    %234 = vector.shape_cast %233 : vector<2xf32> to vector<2x1xf32>
    %cst_125 = arith.constant 3.200000e+01 : f32
    %235 = vector.broadcast %cst_125 : f32 to vector<2x1xf32>
    %236 = arith.divf %234, %235 : vector<2x1xf32>
    %237 = vector.broadcast %236 : vector<2x1xf32> to vector<2x32xf32>
    %238 = arith.subf %230, %237 : vector<2x32xf32>
    %239 = arith.mulf %238, %238 : vector<2x32xf32>
    %cst_126 = arith.constant dense<0.000000e+00> : vector<2xf32>
    %240 = vector.multi_reduction <add>, %239, %cst_126 [1] : vector<2x32xf32> to vector<2xf32>
    %241 = vector.shape_cast %240 : vector<2xf32> to vector<2x1xf32>
    %cst_127 = arith.constant 3.200000e+01 : f32
    %242 = vector.broadcast %cst_127 : f32 to vector<2x1xf32>
    %243 = arith.divf %241, %242 : vector<2x1xf32>
    %cst_128 = arith.constant 9.99999974E-6 : f32
    %244 = vector.broadcast %cst_128 : f32 to vector<2x1xf32>
    %245 = arith.addf %243, %244 : vector<2x1xf32>
    %246 = math.rsqrt %245 : vector<2x1xf32>
    %247 = vector.broadcast %246 : vector<2x1xf32> to vector<2x32xf32>
    %248 = arith.mulf %238, %247 : vector<2x32xf32>
    %249 = vector.broadcast %231 : vector<1x32xf32> to vector<2x32xf32>
    %250 = arith.mulf %248, %249 : vector<2x32xf32>
    %251 = vector.broadcast %232 : vector<1x32xf32> to vector<2x32xf32>
    %252 = arith.addf %250, %251 : vector<2x32xf32>
    %c0_129 = arith.constant 0 : index
    %c0_130 = arith.constant 0 : index
    %253 = vector.load %arg19[%c0_129, %c0_130] : memref<32x32xf32, #tpu.memory_space<vmem>>, vector<32x32xf32>
    %cst_131 = arith.constant dense<0.000000e+00> : vector<2x32xf32>
    %254 = tpu.matmul %252, %253, %cst_131 {dimension_numbers = #tpu.dot_dimension_numbers<[1], [0], [0], [1], [0, 0, 1, 1], [], []>} : vector<2x32xf32>, vector<32x32xf32>, vector<2x32xf32> -> vector<2x32xf32>
    %c0_132 = arith.constant 0 : index
    %c0_133 = arith.constant 0 : index
    %255 = vector.load %arg22[%c0_132, %c0_133] : memref<2x32xf32, #tpu.memory_space<vmem>>, vector<2x32xf32>
    tpu.vector_store %arg22[%c0_132, %c0_133], %254 {strides = array<i32>} : memref<2x32xf32, #tpu.memory_space<vmem>>, vector<2x32xf32>,
    return
  }
}

</mosaic_0001>

<llo_original>
// kernel: _eval_forward.1
$region0: #{_eval_forward.1}
  #allocation0 [shape = 'u32[]', space=smem, size = 0x4, offset = 0x4, fixed_abs, tag = 'smem constant byte address 0x4 - core index']
  #allocation1 [shape = 'u32[144,128]{1,0:T(1,128)}', space=vmem, size = 0x12000, scoped, tag = 'internal scratch']
  %s0 = inlined_call_operand.vmem [shape: f32[16,192], index: 0, kind: input, shape index: {}]
  %s1 = inlined_call_operand.vmem [shape: f32[16,32], index: 1, kind: input, shape index: {}]
  %s2 = inlined_call_operand.vmem [shape: f32[192,32], index: 2, kind: input, shape index: {}]
  %s3 = inlined_call_operand.vmem [shape: f32[1,32], index: 3, kind: input, shape index: {}]
  %s4 = inlined_call_operand.vmem [shape: f32[1,32], index: 4, kind: input, shape index: {}]
  %s5 = inlined_call_operand.vmem [shape: f32[1,32], index: 5, kind: input, shape index: {}]
  %s6 = inlined_call_operand.vmem [shape: f32[1,32], index: 6, kind: input, shape index: {}]
  %s7 = inlined_call_operand.vmem [shape: f32[6,32,16], index: 7, kind: input, shape index: {}]
  %s8 = inlined_call_operand.vmem [shape: f32[6,1,16], index: 8, kind: input, shape index: {}]
  %s9 = inlined_call_operand.vmem [shape: f32[2,16,32], index: 9, kind: input, shape index: {}]
  %s10 = inlined_call_operand.vmem [shape: f32[1,32], index: 10, kind: input, shape index: {}]
  %s11 = inlined_call_operand.vmem [shape: f32[1,32], index: 11, kind: input, shape index: {}]
  %s12 = inlined_call_operand.vmem [shape: f32[1,32], index: 12, kind: input, shape index: {}]
  %s13 = inlined_call_operand.vmem [shape: f32[32,128], index: 13, kind: input, shape index: {}]
  %s14 = inlined_call_operand.vmem [shape: f32[1,128], index: 14, kind: input, shape index: {}]
  %s15 = inlined_call_operand.vmem [shape: f32[128,32], index: 15, kind: input, shape index: {}]
  %s16 = inlined_call_operand.vmem [shape: f32[1,32], index: 16, kind: input, shape index: {}]
  %s17 = inlined_call_operand.vmem [shape: f32[1,32], index: 17, kind: input, shape index: {}]
  %s18 = inlined_call_operand.vmem [shape: f32[1,32], index: 18, kind: input, shape index: {}]
  %s19 = inlined_call_operand.vmem [shape: f32[32,32], index: 19, kind: input, shape index: {}]
  %s20 = inlined_call_operand.vmem [shape: f32[8,8], index: 20, kind: input, shape index: {}]
  %s21 = inlined_call_operand.vmem [shape: f32[2,16], index: 21, kind: input, shape index: {}]
  %s22 = inlined_call_operand.hbm [shape: f32[2,32], index: 22, kind: output, shape index: {}]
  %s23 = sld [smem:[#allocation0]]
  $region98: #{_eval_forward.1} parent=0
    _
  %s25 = ssub.s32 1, %s23
  %s26 = scalar_select 0, %s25, %s23
  $region1: #{_eval_forward.1} parent=0
    #allocation2 [shape = 'u8[1024]{0}', space=vmem, size = 0x400, scoped, tag = 'output window, operand 0, single buffered']
    #allocation3 [shape = 's32[1]{0}', space=sflag, size = 0x4, scoped, tag = 'scoped memory for _eval_forward.1']
    %27 = vsyncpa [#allocation3], 0
    // Predicated region
    $region2: #{_eval_forward.1} parent=1 // pred_check
      _
    $region3: #{_eval_forward.1} parent=1 // pred_check_branch
      %29 = sbr.rel (0) target = $region5
    $region4: #{_eval_forward.1} parent=1 // pred_region
      _
    $region5: #{_eval_forward.1} parent=1 // pred_fallthru
      _
    // Predicated region
    $region6: #{_eval_forward.1} parent=1 // pred_check
      _
    $region7: #{_eval_forward.1} parent=1 // pred_check_branch
      %31 = sbr.rel (0) target = $region9
    $region8: #{_eval_forward.1} parent=1 // pred_region
      _
    $region9: #{_eval_forward.1} parent=1 // pred_fallthru
      _
    // Predicated region
    $region10: #{_eval_forward.1} parent=1 // pred_check
      _
    $region11: #{_eval_forward.1} parent=1 // pred_check_branch
      %33 = sbr.rel (0) target = $region13
    $region12: #{_eval_forward.1} parent=1 // pred_region
      _
    $region13: #{_eval_forward.1} parent=1 // pred_fallthru
      _
    // Predicated region
    $region14: #{_eval_forward.1} parent=1 // pred_check
      _
    $region15: #{_eval_forward.1} parent=1 // pred_check_branch
      %35 = sbr.rel (0) target = $region17
    $region16: #{_eval_forward.1} parent=1 // pred_region
      _
    $region17: #{_eval_forward.1} parent=1 // pred_fallthru
      _
    // Predicated region
    $region18: #{_eval_forward.1} parent=1 // pred_check
      _
    $region19: #{_eval_forward.1} parent=1 // pred_check_branch
      %37 = sbr.rel (0) target = $region21
    $region20: #{_eval_forward.1} parent=1 // pred_region
      _
    $region21: #{_eval_forward.1} parent=1 // pred_fallthru
      _
    // Predicated region
    $region22: #{_eval_forward.1} parent=1 // pred_check
      _
    $region23: #{_eval_forward.1} parent=1 // pred_check_branch
      %39 = sbr.rel (0) target = $region25
    $region24: #{_eval_forward.1} parent=1 // pred_region
      _
    $region25: #{_eval_forward.1} parent=1 // pred_fallthru
      _
    // Predicated region
    $region26: #{_eval_forward.1} parent=1 // pred_check
      _
    $region27: #{_eval_forward.1} parent=1 // pred_check_branch
      %41 = sbr.rel (0) target = $region29
    $region28: #{_eval_forward.1} parent=1 // pred_region
      _
    $region29: #{_eval_forward.1} parent=1 // pred_fallthru
      _
    // Predicated region
    $region30: #{_eval_forward.1} parent=1 // pred_check
      _
    $region31: #{_eval_forward.1} parent=1 // pred_check_branch
      %43 = sbr.rel (0) target = $region33
    $region32: #{_eval_forward.1} parent=1 // pred_region
      _
    $region33: #{_eval_forward.1} parent=1 // pred_fallthru
      _
    // Predicated region
    $region34: #{_eval_forward.1} parent=1 // pred_check
      _
    $region35: #{_eval_forward.1} parent=1 // pred_check_branch
      %45 = sbr.rel (0) target = $region37
    $region36: #{_eval_forward.1} parent=1 // pred_region
      _
    $region37: #{_eval_forward.1} parent=1 // pred_fallthru
      _
    // Predicated region
    $region38: #{_eval_forward.1} parent=1 // pred_check
      _
    $region39: #{_eval_forward.1} parent=1 // pred_check_branch
      %47 = sbr.rel (0) target = $region41
    $region40: #{_eval_forward.1} parent=1 // pred_region
      _
    $region41: #{_eval_forward.1} parent=1 // pred_fallthru
      _
    // Predicated region
    $region42: #{_eval_forward.1} parent=1 // pred_check
      _
    $region43: #{_eval_forward.1} parent=1 // pred_check_branch
      %49 = sbr.rel (0) target = $region45
    $region44: #{_eval_forward.1} parent=1 // pred_region
      _
    $region45: #{_eval_forward.1} parent=1 // pred_fallthru
      _
    // Predicated region
    $region46: #{_eval_forward.1} parent=1 // pred_check
      _
    $region47: #{_eval_forward.1} parent=1 // pred_check_branch
      %51 = sbr.rel (0) target = $region49
    $region48: #{_eval_forward.1} parent=1 // pred_region
      _
    $region49: #{_eval_forward.1} parent=1 // pred_fallthru
      _
    // Predicated region
    $region50: #{_eval_forward.1} parent=1 // pred_check
      _
    $region51: #{_eval_forward.1} parent=1 // pred_check_branch
      %53 = sbr.rel (0) target = $region53
    $region52: #{_eval_forward.1} parent=1 // pred_region
      _
    $region53: #{_eval_forward.1} parent=1 // pred_fallthru
      _
    // Predicated region
    $region54: #{_eval_forward.1} parent=1 // pred_check
      _
    $region55: #{_eval_forward.1} parent=1 // pred_check_branch
      %55 = sbr.rel (0) target = $region57
    $region56: #{_eval_forward.1} parent=1 // pred_region
      _
    $region57: #{_eval_forward.1} parent=1 // pred_fallthru
      _
    // Predicated region
    $region58: #{_eval_forward.1} parent=1 // pred_check
      _
    $region59: #{_eval_forward.1} parent=1 // pred_check_branch
      %57 = sbr.rel (0) target = $region61
    $region60: #{_eval_forward.1} parent=1 // pred_region
      _
    $region61: #{_eval_forward.1} parent=1 // pred_fallthru
      _
    // Predicated region
    $region62: #{_eval_forward.1} parent=1 // pred_check
      _
    $region63: #{_eval_forward.1} parent=1 // pred_check_branch
      %59 = sbr.rel (0) target = $region65
    $region64: #{_eval_forward.1} parent=1 // pred_region
      _
    $region65: #{_eval_forward.1} parent=1 // pred_fallthru
      _
    // Predicated region
    $region66: #{_eval_forward.1} parent=1 // pred_check
      _
    $region67: #{_eval_forward.1} parent=1 // pred_check_branch
      %61 = sbr.rel (0) target = $region69
    $region68: #{_eval_forward.1} parent=1 // pred_region
      _
    $region69: #{_eval_forward.1} parent=1 // pred_fallthru
      _
    // Predicated region
    $region70: #{_eval_forward.1} parent=1 // pred_check
      _
    $region71: #{_eval_forward.1} parent=1 // pred_check_branch
      %63 = sbr.rel (0) target = $region73
    $region72: #{_eval_forward.1} parent=1 // pred_region
      _
    $region73: #{_eval_forward.1} parent=1 // pred_fallthru
      _
    // Predicated region
    $region74: #{_eval_forward.1} parent=1 // pred_check
      _
    $region75: #{_eval_forward.1} parent=1 // pred_check_branch
      %65 = sbr.rel (0) target = $region77
    $region76: #{_eval_forward.1} parent=1 // pred_region
      _
    $region77: #{_eval_forward.1} parent=1 // pred_fallthru
      _
    // Predicated region
    $region78: #{_eval_forward.1} parent=1 // pred_check
      _
    $region79: #{_eval_forward.1} parent=1 // pred_check_branch
      %67 = sbr.rel (0) target = $region81
    $region80: #{_eval_forward.1} parent=1 // pred_region
      _
    $region81: #{_eval_forward.1} parent=1 // pred_fallthru
      _
    // Predicated region
    $region82: #{_eval_forward.1} parent=1 // pred_check
      _
    $region83: #{_eval_forward.1} parent=1 // pred_check_branch
      %69 = sbr.rel (0) target = $region85
    $region84: #{_eval_forward.1} parent=1 // pred_region
      _
    $region85: #{_eval_forward.1} parent=1 // pred_fallthru
      _
    // Predicated region
    $region86: #{_eval_forward.1} parent=1 // pred_check
      _
    $region87: #{_eval_forward.1} parent=1 // pred_check_branch
      %71 = sbr.rel (0) target = $region89
    $region88: #{_eval_forward.1} parent=1 // pred_region
      _
    $region89: #{_eval_forward.1} parent=1 // pred_fallthru
      _
    %v72 = vld [vmem:[%s0] sm:$0xff]
    %v73 = vld [vmem:[%s0 + $0x8] sm:$0xff]
    %v74 = vld [vmem:[%s0 + $0x10] sm:$0xff]
    %v75 = vld [vmem:[%s0 + $0x18] sm:$0xff]
    %v76 = vld [vmem:[%s2] sm:$0xff]
    %v77 = vld [vmem:[%s2 + $0x8] sm:$0xff]
    %v78 = vld [vmem:[%s2 + $0x10] sm:$0xff]
    %v79 = vld [vmem:[%s2 + $0x18] sm:$0xff]
    %v80 = vld [vmem:[%s2 + $0x20] sm:$0xff]
    %v81 = vld [vmem:[%s2 + $0x28] sm:$0xff]
    %v82 = vld [vmem:[%s2 + $0x30] sm:$0xff]
    %v83 = vld [vmem:[%s2 + $0x38] sm:$0xff]
    %v84 = vld [vmem:[%s2 + $0x40] sm:$0xff]
    %v85 = vld [vmem:[%s2 + $0x48] sm:$0xff]
    %v86 = vld [vmem:[%s2 + $0x50] sm:$0xff]
    %v87 = vld [vmem:[%s2 + $0x58] sm:$0xff]
    %v88 = vld [vmem:[%s2 + $0x60] sm:$0xff]
    %v89 = vld [vmem:[%s2 + $0x68] sm:$0xff]
    %v90 = vld [vmem:[%s2 + $0x70] sm:$0xff]
    %v91 = vld [vmem:[%s2 + $0x78] sm:$0xff]
    %v92 = vld [vmem:[%s2 + $0x80] sm:$0xff]
    %v93 = vld [vmem:[%s2 + $0x88] sm:$0xff]
    %v94 = vld [vmem:[%s2 + $0x90] sm:$0xff]
    %v95 = vld [vmem:[%s2 + $0x98] sm:$0xff]
    %v96 = vld [vmem:[%s2 + $0xa0] sm:$0xff]
    %v97 = vld [vmem:[%s2 + $0xa8] sm:$0xff]
    %v98 = vld [vmem:[%s2 + $0xb0] sm:$0xff]
    %v99 = vld [vmem:[%s2 + $0xb8] sm:$0xff]
    %v100 = vld [vmem:[%s1] sm:$0xff]
    %v101 = vld [vmem:[%s1 + $0x8] sm:$0xff]
    %vm102 = vcmask 523264
    %v104 = vsel %vm102, %v73, 0
    %v107 = vsel %vm102, %v75, 0
    %109 = vmatprep.subr.mxu0 0.0
    %110 = vmatpush1.msra.mxu0 %v91
    %111 = vmatprep.subr.mxu0 0.0
    %112 = vmatpush1.msra.mxu0 %v90
    %113 = vmatprep.subr.mxu0 0.0
    %114 = vmatpush1.msra.mxu0 %v89
    %115 = vmatprep.subr.mxu0 0.0
    %116 = vmatpush1.msra.mxu0 %v88
    %117 = vmatprep.subr.mxu0 0.0
    %118 = vmatpush1.msra.mxu0 %v87
    %119 = vmatprep.subr.mxu0 0.0
    %120 = vmatpush1.msra.mxu0 %v86
    %121 = vmatprep.subr.mxu0 0.0
    %122 = vmatpush1.msra.mxu0 %v85
    %123 = vmatprep.subr.mxu0 0.0
    %124 = vmatpush1.msra.mxu0 %v84
    %125 = vmatprep.subr.mxu0 0.0
    %126 = vmatpush1.msra.mxu0 %v83
    %127 = vmatprep.subr.mxu0 0.0
    %128 = vmatpush1.msra.mxu0 %v82
    %129 = vmatprep.subr.mxu0 0.0
    %130 = vmatpush1.msra.mxu0 %v81
    %131 = vmatprep.subr.mxu0 0.0
    %132 = vmatpush1.msra.mxu0 %v80
    %133 = vmatprep.subr.mxu0 0.0
    %134 = vmatpush1.msra.mxu0 %v79
    %135 = vmatprep.subr.mxu0 0.0
    %136 = vmatpush1.msra.mxu0 %v78
    %137 = vmatprep.subr.mxu0 0.0
    %138 = vmatpush1.msra.mxu0 %v77
    %139 = vmatprep.subr.mxu0 0.0
    %140 = vmatpush1.msra.mxu0 %v76
    %141 = vmatprep.subr.mxu0 0.0
    %142 = vmatpush2.msra.mxu0 0.0
    %143 = vmatprep.subr.mxu0 0.0
    %144 = vmatpush2.msra.mxu0 0.0
    %145 = vmatprep.subr.mxu0 0.0
    %146 = vmatpush2.msra.mxu0 0.0
    %147 = vmatprep.subr.mxu0 0.0
    %148 = vmatpush2.msra.mxu0 0.0
    %149 = vmatprep.subr.mxu0 0.0
    %150 = vmatpush2.msra.mxu0 0.0
    %151 = vmatprep.subr.mxu0 0.0
    %152 = vmatpush2.msra.mxu0 0.0
    %153 = vmatprep.subr.mxu0 0.0
    %154 = vmatpush2.msra.mxu0 0.0
    %155 = vmatprep.subr.mxu0 0.0
    %156 = vmatpush2.msra.mxu0 0.0
    %157 = vmatprep.subr.mxu0 0.0
    %158 = vmatpush2.msra.mxu0 %v99
    %159 = vmatprep.subr.mxu0 0.0
    %160 = vmatpush2.msra.mxu0 %v98
    %161 = vmatprep.subr.mxu0 0.0
    %162 = vmatpush2.msra.mxu0 %v97
    %163 = vmatprep.subr.mxu0 0.0
    %164 = vmatpush2.msra.mxu0 %v96
    %165 = vmatprep.subr.mxu0 0.0
    %166 = vmatpush2.msra.mxu0 %v95
    %167 = vmatprep.subr.mxu0 0.0
    %168 = vmatpush2.msra.mxu0 %v94
    %169 = vmatprep.subr.mxu0 0.0
    %170 = vmatpush2.msra.mxu0 %v93
    %171 = vmatprep.subr.mxu0 0.0
    %172 = vmatpush2.msra.mxu0 %v92
    %173 = vmatprep.mubr.f32.mxu0 %v104
    %174 = vmatmul.mubr.f32.gmra.mxu0 %v72
    %v175 = vpop.f32.mrf.mxu0
    %v176 = vadd.f32 %v100, %v175
    %v177 = vpop.f32.mrf.mxu0
    %178 = vmatprep.mubr.f32.mxu0 %v107
    %179 = vmatmul.mubr.f32.gmra.mxu0 %v74
    %v180 = vpop.f32.mrf.mxu0
    %v181 = vadd.f32 %v101, %v180
    %v182 = vpop.f32.mrf.mxu0
    %183 = vdwg.mxu0
    %v184 = vld [vmem:[%s3] sm:$0x1]
    %v185 = vld [vmem:[%s4] sm:$0x1]
    %vm186 = vcmask 261120
    %v187 = vsel %vm186, %v176, 0.0
    %188 = vadd.xlane.f32.xlu0 %v187
    %v189 = vpop.xlane.xlu0 %188
    %v190 = vsel %vm186, %v181, 0.0
    %191 = vadd.xlane.f32.xlu0 %v190
    %v192 = vpop.xlane.xlu0 %191
    %v193 = vrcp.pop 32.0
    %v194 = vmul.f32 %v189, %v193
    %v195 = vmul.f32 %v192, %v193
    %v196 = vsub.f32 %v176, %v194
    %v197 = vsub.f32 %v181, %v195
    %v198 = vmul.f32 %v196, %v196
    %v199 = vmul.f32 %v197, %v197
    %v200 = vsel %vm186, %v198, 0.0
    %201 = vadd.xlane.f32.xlu0 %v200
    %v202 = vpop.xlane.xlu0 %201
    %v203 = vsel %vm186, %v199, 0.0
    %204 = vadd.xlane.f32.xlu0 %v203
    %v205 = vpop.xlane.xlu0 %204
    %v206 = vmul.f32 %v202, %v193
    %v207 = vmul.f32 %v205, %v193
    %v208 = vadd.f32 %v206, 1e-05
    %v209 = vadd.f32 %v207, 1e-05
    %v210 = vrsqrt.pop %v208
    %v211 = vrsqrt.pop %v209
    %v212 = vmul.f32 %v196, %v210
    %v213 = vmul.f32 %v197, %v211
    %v215 = vlaneseq
    %v216 = vshrl.u32 %v215, 7
    %v217 = vsub.s32 0, %v216
    %v218 = vrot.slane %v184, %v217
    %v220 = vmul.f32 %v212, %v218
    %v221 = vmul.f32 %v213, %v218
    %v223 = vlaneseq
    %v224 = vshrl.u32 %v223, 7
    %v225 = vsub.s32 0, %v224
    %v226 = vrot.slane %v185, %v225
    %v228 = vadd.f32 %v220, %v226
    %v229 = vadd.f32 %v221, %v226
    %v230 = vld [vmem:[%s5] sm:$0x1]
    %v231 = vld [vmem:[%s6] sm:$0x1]
    %v232 = vld [vmem:[%s10] sm:$0x1]
    %v233 = vld [vmem:[%s11] sm:$0x1]
    %v234 = vld [vmem:[%s12] sm:$0x1]
    %v235 = vld [vmem:[%s13] sm:$0xff]
    %v236 = vld [vmem:[%s13 + $0x8] sm:$0xff]
    %v237 = vld [vmem:[%s13 + $0x10] sm:$0xff]
    %v238 = vld [vmem:[%s13 + $0x18] sm:$0xff]
    %v239 = vld [vmem:[%s14] sm:$0x1]
    %v240 = vld [vmem:[%s15] sm:$0xff]
    %v241 = vld [vmem:[%s15 + $0x8] sm:$0xff]
    %v242 = vld [vmem:[%s15 + $0x10] sm:$0xff]
    %v243 = vld [vmem:[%s15 + $0x18] sm:$0xff]
    %v244 = vld [vmem:[%s15 + $0x20] sm:$0xff]
    %v245 = vld [vmem:[%s15 + $0x28] sm:$0xff]
    %v246 = vld [vmem:[%s15 + $0x30] sm:$0xff]
    %v247 = vld [vmem:[%s15 + $0x38] sm:$0xff]
    %v248 = vld [vmem:[%s15 + $0x40] sm:$0xff]
    %v249 = vld [vmem:[%s15 + $0x48] sm:$0xff]
    %v250 = vld [vmem:[%s15 + $0x50] sm:$0xff]
    %v251 = vld [vmem:[%s15 + $0x58] sm:$0xff]
    %v252 = vld [vmem:[%s15 + $0x60] sm:$0xff]
    %v253 = vld [vmem:[%s15 + $0x68] sm:$0xff]
    %v254 = vld [vmem:[%s15 + $0x70] sm:$0xff]
    %v255 = vld [vmem:[%s15 + $0x78] sm:$0xff]
    %v256 = vld [vmem:[%s16] sm:$0x1]
    %v257 = vld [vmem:[%s20] sm:$0xff]
    %v258 = vsel %vm186, %v228, 0.0
    %259 = vadd.xlane.f32.xlu0 %v258
    %v260 = vpop.xlane.xlu0 %259
    %v261 = vsel %vm186, %v229, 0.0
    %262 = vadd.xlane.f32.xlu0 %v261
    %v263 = vpop.xlane.xlu0 %262
    %v264 = vmul.f32 %v260, %v193
    %v265 = vmul.f32 %v263, %v193
    %v266 = vsub.f32 %v228, %v264
    %v267 = vsub.f32 %v229, %v265
    %v268 = vmul.f32 %v266, %v266
    %v269 = vmul.f32 %v267, %v267
    %v270 = vsel %vm186, %v268, 0.0
    %271 = vadd.xlane.f32.xlu0 %v270
    %v272 = vpop.xlane.xlu0 %271
    %v273 = vsel %vm186, %v269, 0.0
    %274 = vadd.xlane.f32.xlu0 %v273
    %v275 = vpop.xlane.xlu0 %274
    %v276 = vmul.f32 %v272, %v193
    %v277 = vmul.f32 %v275, %v193
    %v278 = vadd.f32 %v276, 1e-05
    %v279 = vadd.f32 %v277, 1e-05
    %v280 = vrsqrt.pop %v278
    %v281 = vrsqrt.pop %v279
    %v282 = vmul.f32 %v266, %v280
    %v283 = vmul.f32 %v267, %v281
    %v285 = vlaneseq
    %v286 = vshrl.u32 %v285, 7
    %v287 = vsub.s32 0, %v286
    %v288 = vrot.slane %v230, %v287
    %v290 = vmul.f32 %v282, %v288
    %v291 = vmul.f32 %v283, %v288
    %v293 = vlaneseq
    %v294 = vshrl.u32 %v293, 7
    %v295 = vsub.s32 0, %v294
    %v296 = vrot.slane %v231, %v295
    %v298 = vadd.f32 %v290, %v296
    %v299 = vadd.f32 %v291, %v296
    %v300 = vld [vmem:[%s7] sm:$0xff]
    %v301 = vld [vmem:[%s7 + $0x8] sm:$0xff]
    %v302 = vld [vmem:[%s7 + $0x10] sm:$0xff]
    %v303 = vld [vmem:[%s7 + $0x18] sm:$0xff]
    %v304 = vld [vmem:[%s8] sm:$0x1]
    %v306 = vlaneseq
    %v307 = vshrl.u32 %v306, 7
    %v308 = vsub.s32 0, %v307
    %v309 = vrot.slane %v304, %v308
    %v312 = vsel %vm186, %v298, 0
    %v315 = vsel %vm186, %v299, 0
    %317 = vmatprep.subr.mxu0 0.0
    %318 = vmatpush1.msra.mxu0 0.0
    %319 = vmatprep.subr.mxu0 0.0
    %320 = vmatpush1.msra.mxu0 0.0
    %321 = vmatprep.subr.mxu0 0.0
    %322 = vmatpush1.msra.mxu0 0.0
    %323 = vmatprep.subr.mxu0 0.0
    %324 = vmatpush1.msra.mxu0 0.0
    %325 = vmatprep.subr.mxu0 0.0
    %326 = vmatpush1.msra.mxu0 0.0
    %327 = vmatprep.subr.mxu0 0.0
    %328 = vmatpush1.msra.mxu0 0.0
    %329 = vmatprep.subr.mxu0 0.0
    %330 = vmatpush1.msra.mxu0 0.0
    %331 = vmatprep.subr.mxu0 0.0
    %332 = vmatpush1.msra.mxu0 0.0
    %333 = vmatprep.subr.mxu0 0.0
    %334 = vmatpush1.msra.mxu0 0.0
    %335 = vmatprep.subr.mxu0 0.0
    %336 = vmatpush1.msra.mxu0 0.0
    %337 = vmatprep.subr.mxu0 0.0
    %338 = vmatpush1.msra.mxu0 0.0
    %339 = vmatprep.subr.mxu0 0.0
    %340 = vmatpush1.msra.mxu0 0.0
    %341 = vmatprep.subr.mxu0 0.0
    %342 = vmatpush1.msra.mxu0 %v303
    %343 = vmatprep.subr.mxu0 0.0
    %344 = vmatpush1.msra.mxu0 %v302
    %345 = vmatprep.subr.mxu0 0.0
    %346 = vmatpush1.msra.mxu0 %v301
    %347 = vmatprep.subr.mxu0 0.0
    %348 = vmatpush1.msra.mxu0 %v300
    %349 = vmatprep.subr.mxu0 0.0
    %350 = vmatpush2.msra.mxu0 0.0
    %351 = vmatprep.subr.mxu0 0.0
    %352 = vmatpush2.msra.mxu0 0.0
    %353 = vmatprep.subr.mxu0 0.0
    %354 = vmatpush2.msra.mxu0 0.0
    %355 = vmatprep.subr.mxu0 0.0
    %356 = vmatpush2.msra.mxu0 0.0
    %357 = vmatprep.subr.mxu0 0.0
    %358 = vmatpush2.msra.mxu0 0.0
    %359 = vmatprep.subr.mxu0 0.0
    %360 = vmatpush2.msra.mxu0 0.0
    %361 = vmatprep.subr.mxu0 0.0
    %362 = vmatpush2.msra.mxu0 0.0
    %363 = vmatprep.subr.mxu0 0.0
    %364 = vmatpush2.msra.mxu0 0.0
    %365 = vmatprep.subr.mxu0 0.0
    %366 = vmatpush2.msra.mxu0 0.0
    %367 = vmatprep.subr.mxu0 0.0
    %368 = vmatpush2.msra.mxu0 0.0
    %369 = vmatprep.subr.mxu0 0.0
    %370 = vmatpush2.msra.mxu0 0.0
    %371 = vmatprep.subr.mxu0 0.0
    %372 = vmatpush2.msra.mxu0 0.0
    %373 = vmatprep.subr.mxu0 0.0
    %374 = vmatpush2.msra.mxu0 0.0
    %375 = vmatprep.subr.mxu0 0.0
    %376 = vmatpush2.msra.mxu0 0.0
    %377 = vmatprep.subr.mxu0 0.0
    %378 = vmatpush2.msra.mxu0 0.0
    %379 = vmatprep.subr.mxu0 0.0
    %380 = vmatpush2.msra.mxu0 0.0
    %381 = vmatprep.mubr.f32.mxu0 0.0
    %382 = vmatmul.mubr.f32.gmra.mxu0 %v312
    %v383 = vpop.f32.mrf.mxu0
    %v384 = vadd.f32 %v309, %v383
    %v385 = vpop.f32.mrf.mxu0
    %386 = vmatprep.mubr.f32.mxu0 0.0
    %387 = vmatmul.mubr.f32.gmra.mxu0 %v315
    %v388 = vpop.f32.mrf.mxu0
    %v389 = vadd.f32 %v309, %v388
    %v390 = vpop.f32.mrf.mxu0
    %391 = vdwg.mxu0
    %s392 = scalar_lea.vmem %s7, 64
    %v393 = vld [vmem:[%s392] sm:$0xff]
    %v394 = vld [vmem:[%s392 + $0x8] sm:$0xff]
    %v395 = vld [vmem:[%s392 + $0x10] sm:$0xff]
    %v396 = vld [vmem:[%s392 + $0x18] sm:$0xff]
    %s397 = scalar_lea.vmem %s8, 2
    %v398 = vld [vmem:[%s397] sm:$0x1]
    %v400 = vlaneseq
    %v401 = vshrl.u32 %v400, 7
    %v402 = vsub.s32 0, %v401
    %v403 = vrot.slane %v398, %v402
    %405 = vmatprep.subr.mxu0 0.0
    %406 = vmatpush1.msra.mxu0 0.0
    %407 = vmatprep.subr.mxu0 0.0
    %408 = vmatpush1.msra.mxu0 0.0
    %409 = vmatprep.subr.mxu0 0.0
    %410 = vmatpush1.msra.mxu0 0.0
    %411 = vmatprep.subr.mxu0 0.0
    %412 = vmatpush1.msra.mxu0 0.0
    %413 = vmatprep.subr.mxu0 0.0
    %414 = vmatpush1.msra.mxu0 0.0
    %415 = vmatprep.subr.mxu0 0.0
    %416 = vmatpush1.msra.mxu0 0.0
    %417 = vmatprep.subr.mxu0 0.0
    %418 = vmatpush1.msra.mxu0 0.0
    %419 = vmatprep.subr.mxu0 0.0
    %420 = vmatpush1.msra.mxu0 0.0
    %421 = vmatprep.subr.mxu0 0.0
    %422 = vmatpush1.msra.mxu0 0.0
    %423 = vmatprep.subr.mxu0 0.0
    %424 = vmatpush1.msra.mxu0 0.0
    %425 = vmatprep.subr.mxu0 0.0
    %426 = vmatpush1.msra.mxu0 0.0
    %427 = vmatprep.subr.mxu0 0.0
    %428 = vmatpush1.msra.mxu0 0.0
    %429 = vmatprep.subr.mxu0 0.0
    %430 = vmatpush1.msra.mxu0 %v396
    %431 = vmatprep.subr.mxu0 0.0
    %432 = vmatpush1.msra.mxu0 %v395
    %433 = vmatprep.subr.mxu0 0.0
    %434 = vmatpush1.msra.mxu0 %v394
    %435 = vmatprep.subr.mxu0 0.0
    %436 = vmatpush1.msra.mxu0 %v393
    %437 = vmatprep.subr.mxu0 0.0
    %438 = vmatpush2.msra.mxu0 0.0
    %439 = vmatprep.subr.mxu0 0.0
    %440 = vmatpush2.msra.mxu0 0.0
    %441 = vmatprep.subr.mxu0 0.0
    %442 = vmatpush2.msra.mxu0 0.0
    %443 = vmatprep.subr.mxu0 0.0
    %444 = vmatpush2.msra.mxu0 0.0
    %445 = vmatprep.subr.mxu0 0.0
    %446 = vmatpush2.msra.mxu0 0.0
    %447 = vmatprep.subr.mxu0 0.0
    %448 = vmatpush2.msra.mxu0 0.0
    %449 = vmatprep.subr.mxu0 0.0
    %450 = vmatpush2.msra.mxu0 0.0
    %451 = vmatprep.subr.mxu0 0.0
    %452 = vmatpush2.msra.mxu0 0.0
    %453 = vmatprep.subr.mxu0 0.0
    %454 = vmatpush2.msra.mxu0 0.0
    %455 = vmatprep.subr.mxu0 0.0
    %456 = vmatpush2.msra.mxu0 0.0
    %457 = vmatprep.subr.mxu0 0.0
    %458 = vmatpush2.msra.mxu0 0.0
    %459 = vmatprep.subr.mxu0 0.0
    %460 = vmatpush2.msra.mxu0 0.0
    %461 = vmatprep.subr.mxu0 0.0
    %462 = vmatpush2.msra.mxu0 0.0
    %463 = vmatprep.subr.mxu0 0.0
    %464 = vmatpush2.msra.mxu0 0.0
    %465 = vmatprep.subr.mxu0 0.0
    %466 = vmatpush2.msra.mxu0 0.0
    %467 = vmatprep.subr.mxu0 0.0
    %468 = vmatpush2.msra.mxu0 0.0
    %469 = vmatprep.mubr.f32.mxu0 0.0
    %470 = vmatmul.mubr.f32.gmra.mxu0 %v312
    %v471 = vpop.f32.mrf.mxu0
    %v472 = vadd.f32 %v403, %v471
    %v473 = vpop.f32.mrf.mxu0
    %474 = vmatprep.mubr.f32.mxu0 0.0
    %475 = vmatmul.mubr.f32.gmra.mxu0 %v315
    %v476 = vpop.f32.mrf.mxu0
    %v477 = vadd.f32 %v403, %v476
    %v478 = vpop.f32.mrf.mxu0
    %479 = vdwg.mxu0
    %s480 = scalar_lea.vmem %s7, 128
    %v481 = vld [vmem:[%s480] sm:$0xff]
    %v482 = vld [vmem:[%s480 + $0x8] sm:$0xff]
    %v483 = vld [vmem:[%s480 + $0x10] sm:$0xff]
    %v484 = vld [vmem:[%s480 + $0x18] sm:$0xff]
    %s485 = scalar_lea.vmem %s8, 4
    %v486 = vld [vmem:[%s485] sm:$0x1]
    %v488 = vlaneseq
    %v489 = vshrl.u32 %v488, 7
    %v490 = vsub.s32 0, %v489
    %v491 = vrot.slane %v486, %v490
    %493 = vmatprep.subr.mxu0 0.0
    %494 = vmatpush1.msra.mxu0 0.0
    %495 = vmatprep.subr.mxu0 0.0
    %496 = vmatpush1.msra.mxu0 0.0
    %497 = vmatprep.subr.mxu0 0.0
    %498 = vmatpush1.msra.mxu0 0.0
    %499 = vmatprep.subr.mxu0 0.0
    %500 = vmatpush1.msra.mxu0 0.0
    %501 = vmatprep.subr.mxu0 0.0
    %502 = vmatpush1.msra.mxu0 0.0
    %503 = vmatprep.subr.mxu0 0.0
    %504 = vmatpush1.msra.mxu0 0.0
    %505 = vmatprep.subr.mxu0 0.0
    %506 = vmatpush1.msra.mxu0 0.0
    %507 = vmatprep.subr.mxu0 0.0
    %508 = vmatpush1.msra.mxu0 0.0
    %509 = vmatprep.subr.mxu0 0.0
    %510 = vmatpush1.msra.mxu0 0.0
    %511 = vmatprep.subr.mxu0 0.0
    %512 = vmatpush1.msra.mxu0 0.0
    %513 = vmatprep.subr.mxu0 0.0
    %514 = vmatpush1.msra.mxu0 0.0
    %515 = vmatprep.subr.mxu0 0.0
    %516 = vmatpush1.msra.mxu0 0.0
    %517 = vmatprep.subr.mxu0 0.0
    %518 = vmatpush1.msra.mxu0 %v484
    %519 = vmatprep.subr.mxu0 0.0
    %520 = vmatpush1.msra.mxu0 %v483
    %521 = vmatprep.subr.mxu0 0.0
    %522 = vmatpush1.msra.mxu0 %v482
    %523 = vmatprep.subr.mxu0 0.0
    %524 = vmatpush1.msra.mxu0 %v481
    %525 = vmatprep.subr.mxu0 0.0
    %526 = vmatpush2.msra.mxu0 0.0
    %527 = vmatprep.subr.mxu0 0.0
    %528 = vmatpush2.msra.mxu0 0.0
    %529 = vmatprep.subr.mxu0 0.0
    %530 = vmatpush2.msra.mxu0 0.0
    %531 = vmatprep.subr.mxu0 0.0
    %532 = vmatpush2.msra.mxu0 0.0
    %533 = vmatprep.subr.mxu0 0.0
    %534 = vmatpush2.msra.mxu0 0.0
    %535 = vmatprep.subr.mxu0 0.0
    %536 = vmatpush2.msra.mxu0 0.0
    %537 = vmatprep.subr.mxu0 0.0
    %538 = vmatpush2.msra.mxu0 0.0
    %539 = vmatprep.subr.mxu0 0.0
    %540 = vmatpush2.msra.mxu0 0.0
    %541 = vmatprep.subr.mxu0 0.0
    %542 = vmatpush2.msra.mxu0 0.0
    %543 = vmatprep.subr.mxu0 0.0
    %544 = vmatpush2.msra.mxu0 0.0
    %545 = vmatprep.subr.mxu0 0.0
    %546 = vmatpush2.msra.mxu0 0.0
    %547 = vmatprep.subr.mxu0 0.0
    %548 = vmatpush2.msra.mxu0 0.0
    %549 = vmatprep.subr.mxu0 0.0
    %550 = vmatpush2.msra.mxu0 0.0
    %551 = vmatprep.subr.mxu0 0.0
    %552 = vmatpush2.msra.mxu0 0.0
    %553 = vmatprep.subr.mxu0 0.0
    %554 = vmatpush2.msra.mxu0 0.0
    %555 = vmatprep.subr.mxu0 0.0
    %556 = vmatpush2.msra.mxu0 0.0
    %557 = vmatprep.mubr.f32.mxu0 0.0
    %558 = vmatmul.mubr.f32.gmra.mxu0 %v312
    %v559 = vpop.f32.mrf.mxu0
    %v560 = vadd.f32 %v491, %v559
    %v561 = vpop.f32.mrf.mxu0
    %562 = vmatprep.mubr.f32.mxu0 0.0
    %563 = vmatmul.mubr.f32.gmra.mxu0 %v315
    %v564 = vpop.f32.mrf.mxu0
    %v565 = vadd.f32 %v491, %v564
    %v566 = vpop.f32.mrf.mxu0
    %567 = vdwg.mxu0
    %v568 = vld [vmem:[%s9] sm:$0xff]
    %v569 = vld [vmem:[%s9 + $0x8] sm:$0xff]
    %vm570 = vcmask 130048
    %v572 = vsel %vm570, %v384, 0
    %v575 = vsel %vm570, %v472, 0
    %577 = vmatprep.subr.mxu0 0.0
    %578 = vmatpush1.xpose.msra.mxu0 0.0
    %579 = vmatprep.subr.mxu0 0.0
    %580 = vmatpush1.xpose.msra.mxu0 0.0
    %581 = vmatprep.subr.mxu0 0.0
    %582 = vmatpush1.xpose.msra.mxu0 0.0
    %583 = vmatprep.subr.mxu0 0.0
    %584 = vmatpush1.xpose.msra.mxu0 0.0
    %585 = vmatprep.subr.mxu0 0.0
    %586 = vmatpush1.xpose.msra.mxu0 0.0
    %587 = vmatprep.subr.mxu0 0.0
    %588 = vmatpush1.xpose.msra.mxu0 0.0
    %589 = vmatprep.subr.mxu0 0.0
    %590 = vmatpush1.xpose.msra.mxu0 0.0
    %591 = vmatprep.subr.mxu0 0.0
    %592 = vmatpush1.xpose.msra.mxu0 0.0
    %593 = vmatprep.subr.mxu0 0.0
    %594 = vmatpush1.xpose.msra.mxu0 0.0
    %595 = vmatprep.subr.mxu0 0.0
    %596 = vmatpush1.xpose.msra.mxu0 0.0
    %597 = vmatprep.subr.mxu0 0.0
    %598 = vmatpush1.xpose.msra.mxu0 0.0
    %599 = vmatprep.subr.mxu0 0.0
    %600 = vmatpush1.xpose.msra.mxu0 0.0
    %601 = vmatprep.subr.mxu0 0.0
    %602 = vmatpush1.xpose.msra.mxu0 0.0
    %603 = vmatprep.subr.mxu0 0.0
    %604 = vmatpush1.xpose.msra.mxu0 0.0
    %605 = vmatprep.subr.mxu0 0.0
    %606 = vmatpush1.xpose.msra.mxu0 0.0
    %607 = vmatprep.subr.mxu0 0.0
    %608 = vmatpush1.xpose.msra.mxu0 %v575
    %609 = vmatprep.subr.mxu0 0.0
    %610 = vmatpush2.xpose.msra.mxu0 0.0
    %611 = vmatprep.subr.mxu0 0.0
    %612 = vmatpush2.xpose.msra.mxu0 0.0
    %613 = vmatprep.subr.mxu0 0.0
    %614 = vmatpush2.xpose.msra.mxu0 0.0
    %615 = vmatprep.subr.mxu0 0.0
    %616 = vmatpush2.xpose.msra.mxu0 0.0
    %617 = vmatprep.subr.mxu0 0.0
    %618 = vmatpush2.xpose.msra.mxu0 0.0
    %619 = vmatprep.subr.mxu0 0.0
    %620 = vmatpush2.xpose.msra.mxu0 0.0
    %621 = vmatprep.subr.mxu0 0.0
    %622 = vmatpush2.xpose.msra.mxu0 0.0
    %623 = vmatprep.subr.mxu0 0.0
    %624 = vmatpush2.xpose.msra.mxu0 0.0
    %625 = vmatprep.subr.mxu0 0.0
    %626 = vmatpush2.xpose.msra.mxu0 0.0
    %627 = vmatprep.subr.mxu0 0.0
    %628 = vmatpush2.xpose.msra.mxu0 0.0
    %629 = vmatprep.subr.mxu0 0.0
    %630 = vmatpush2.xpose.msra.mxu0 0.0
    %631 = vmatprep.subr.mxu0 0.0
    %632 = vmatpush2.xpose.msra.mxu0 0.0
    %633 = vmatprep.subr.mxu0 0.0
    %634 = vmatpush2.xpose.msra.mxu0 0.0
    %635 = vmatprep.subr.mxu0 0.0
    %636 = vmatpush2.xpose.msra.mxu0 0.0
    %637 = vmatprep.subr.mxu0 0.0
    %638 = vmatpush2.xpose.msra.mxu0 0.0
    %639 = vmatprep.subr.mxu0 0.0
    %640 = vmatpush2.xpose.msra.mxu0 0.0
    %641 = vmatprep.mubr.f32.mxu0 0.0
    %642 = vmatmul.mubr.f32.gmra.mxu0 %v572
    %v643 = vpop.f32.mrf.mxu0
    %v644 = vadd.f32 0.0, %v643
    %v645 = vpop.f32.mrf.mxu0
    %646 = vdwg.mxu0
    %v647 = vmul.f32 %v644, 0.25
    %v648 = vadd.f32 %v647, %v257
    %vm649 = vcmask 64512
    %v650 = vsel %vm649, %v648, -inf
    %651 = vmax.xlane.f32.xlu0 %v650
    %v652 = vpop.xlane.xlu0 %651
    %v653 = vsub.f32 %v648, %v652
    %v654 = vmul.f32 %v653, 1.442695
    %v655 = vpow.pop %v654
    %v656 = vsel %vm649, %v655, 0.0
    %657 = vadd.xlane.f32.xlu0 %v656
    %v658 = vpop.xlane.xlu0 %657
    %v659 = vrcp.pop %v658
    %v660 = vmul.f32 %v655, %v659
    %v662 = vsel %vm649, %v660, 0
    %664 = vmatprep.subr.mxu0 0.0
    %665 = vmatpush1.msra.mxu0 0.0
    %666 = vmatprep.subr.mxu0 0.0
    %667 = vmatpush1.msra.mxu0 0.0
    %668 = vmatprep.subr.mxu0 0.0
    %669 = vmatpush1.msra.mxu0 0.0
    %670 = vmatprep.subr.mxu0 0.0
    %671 = vmatpush1.msra.mxu0 0.0
    %672 = vmatprep.subr.mxu0 0.0
    %673 = vmatpush1.msra.mxu0 0.0
    %674 = vmatprep.subr.mxu0 0.0
    %675 = vmatpush1.msra.mxu0 0.0
    %676 = vmatprep.subr.mxu0 0.0
    %677 = vmatpush1.msra.mxu0 0.0
    %678 = vmatprep.subr.mxu0 0.0
    %679 = vmatpush1.msra.mxu0 0.0
    %680 = vmatprep.subr.mxu0 0.0
    %681 = vmatpush1.msra.mxu0 0.0
    %682 = vmatprep.subr.mxu0 0.0
    %683 = vmatpush1.msra.mxu0 0.0
    %684 = vmatprep.subr.mxu0 0.0
    %685 = vmatpush1.msra.mxu0 0.0
    %686 = vmatprep.subr.mxu0 0.0
    %687 = vmatpush1.msra.mxu0 0.0
    %688 = vmatprep.subr.mxu0 0.0
    %689 = vmatpush1.msra.mxu0 0.0
    %690 = vmatprep.subr.mxu0 0.0
    %691 = vmatpush1.msra.mxu0 0.0
    %692 = vmatprep.subr.mxu0 0.0
    %693 = vmatpush1.msra.mxu0 0.0
    %694 = vmatprep.subr.mxu0 0.0
    %695 = vmatpush1.msra.mxu0 %v560
    %696 = vmatprep.subr.mxu0 0.0
    %697 = vmatpush2.msra.mxu0 0.0
    %698 = vmatprep.subr.mxu0 0.0
    %699 = vmatpush2.msra.mxu0 0.0
    %700 = vmatprep.subr.mxu0 0.0
    %701 = vmatpush2.msra.mxu0 0.0
    %702 = vmatprep.subr.mxu0 0.0
    %703 = vmatpush2.msra.mxu0 0.0
    %704 = vmatprep.subr.mxu0 0.0
    %705 = vmatpush2.msra.mxu0 0.0
    %706 = vmatprep.subr.mxu0 0.0
    %707 = vmatpush2.msra.mxu0 0.0
    %708 = vmatprep.subr.mxu0 0.0
    %709 = vmatpush2.msra.mxu0 0.0
    %710 = vmatprep.subr.mxu0 0.0
    %711 = vmatpush2.msra.mxu0 0.0
    %712 = vmatprep.subr.mxu0 0.0
    %713 = vmatpush2.msra.mxu0 0.0
    %714 = vmatprep.subr.mxu0 0.0
    %715 = vmatpush2.msra.mxu0 0.0
    %716 = vmatprep.subr.mxu0 0.0
    %717 = vmatpush2.msra.mxu0 0.0
    %718 = vmatprep.subr.mxu0 0.0
    %719 = vmatpush2.msra.mxu0 0.0
    %720 = vmatprep.subr.mxu0 0.0
    %721 = vmatpush2.msra.mxu0 0.0
    %722 = vmatprep.subr.mxu0 0.0
    %723 = vmatpush2.msra.mxu0 0.0
    %724 = vmatprep.subr.mxu0 0.0
    %725 = vmatpush2.msra.mxu0 0.0
    %726 = vmatprep.subr.mxu0 0.0
    %727 = vmatpush2.msra.mxu0 0.0
    %728 = vmatprep.mubr.f32.mxu0 0.0
    %729 = vmatmul.mubr.f32.gmra.mxu0 %v662
    %v730 = vpop.f32.mrf.mxu0
    %v731 = vadd.f32 0.0, %v730
    %v732 = vpop.f32.mrf.mxu0
    %733 = vdwg.mxu0
    %v735 = vsel %vm570, %v389, 0
    %v738 = vsel %vm570, %v477, 0
    %740 = vmatprep.subr.mxu0 0.0
    %741 = vmatpush1.xpose.msra.mxu0 0.0
    %742 = vmatprep.subr.mxu0 0.0
    %743 = vmatpush1.xpose.msra.mxu0 0.0
    %744 = vmatprep.subr.mxu0 0.0
    %745 = vmatpush1.xpose.msra.mxu0 0.0
    %746 = vmatprep.subr.mxu0 0.0
    %747 = vmatpush1.xpose.msra.mxu0 0.0
    %748 = vmatprep.subr.mxu0 0.0
    %749 = vmatpush1.xpose.msra.mxu0 0.0
    %750 = vmatprep.subr.mxu0 0.0
    %751 = vmatpush1.xpose.msra.mxu0 0.0
    %752 = vmatprep.subr.mxu0 0.0
    %753 = vmatpush1.xpose.msra.mxu0 0.0
    %754 = vmatprep.subr.mxu0 0.0
    %755 = vmatpush1.xpose.msra.mxu0 0.0
    %756 = vmatprep.subr.mxu0 0.0
    %757 = vmatpush1.xpose.msra.mxu0 0.0
    %758 = vmatprep.subr.mxu0 0.0
    %759 = vmatpush1.xpose.msra.mxu0 0.0
    %760 = vmatprep.subr.mxu0 0.0
    %761 = vmatpush1.xpose.msra.mxu0 0.0
    %762 = vmatprep.subr.mxu0 0.0
    %763 = vmatpush1.xpose.msra.mxu0 0.0
    %764 = vmatprep.subr.mxu0 0.0
    %765 = vmatpush1.xpose.msra.mxu0 0.0
    %766 = vmatprep.subr.mxu0 0.0
    %767 = vmatpush1.xpose.msra.mxu0 0.0
    %768 = vmatprep.subr.mxu0 0.0
    %769 = vmatpush1.xpose.msra.mxu0 0.0
    %770 = vmatprep.subr.mxu0 0.0
    %771 = vmatpush1.xpose.msra.mxu0 %v738
    %772 = vmatprep.subr.mxu0 0.0
    %773 = vmatpush2.xpose.msra.mxu0 0.0
    %774 = vmatprep.subr.mxu0 0.0
    %775 = vmatpush2.xpose.msra.mxu0 0.0
    %776 = vmatprep.subr.mxu0 0.0
    %777 = vmatpush2.xpose.msra.mxu0 0.0
    %778 = vmatprep.subr.mxu0 0.0
    %779 = vmatpush2.xpose.msra.mxu0 0.0
    %780 = vmatprep.subr.mxu0 0.0
    %781 = vmatpush2.xpose.msra.mxu0 0.0
    %782 = vmatprep.subr.mxu0 0.0
    %783 = vmatpush2.xpose.msra.mxu0 0.0
    %784 = vmatprep.subr.mxu0 0.0
    %785 = vmatpush2.xpose.msra.mxu0 0.0
    %786 = vmatprep.subr.mxu0 0.0
    %787 = vmatpush2.xpose.msra.mxu0 0.0
    %788 = vmatprep.subr.mxu0 0.0
    %789 = vmatpush2.xpose.msra.mxu0 0.0
    %790 = vmatprep.subr.mxu0 0.0
    %791 = vmatpush2.xpose.msra.mxu0 0.0
    %792 = vmatprep.subr.mxu0 0.0
    %793 = vmatpush2.xpose.msra.mxu0 0.0
    %794 = vmatprep.subr.mxu0 0.0
    %795 = vmatpush2.xpose.msra.mxu0 0.0
    %796 = vmatprep.subr.mxu0 0.0
    %797 = vmatpush2.xpose.msra.mxu0 0.0
    %798 = vmatprep.subr.mxu0 0.0
    %799 = vmatpush2.xpose.msra.mxu0 0.0
    %800 = vmatprep.subr.mxu0 0.0
    %801 = vmatpush2.xpose.msra.mxu0 0.0
    %802 = vmatprep.subr.mxu0 0.0
    %803 = vmatpush2.xpose.msra.mxu0 0.0
    %804 = vmatprep.mubr.f32.mxu0 0.0
    %805 = vmatmul.mubr.f32.gmra.mxu0 %v735
    %v806 = vpop.f32.mrf.mxu0
    %v807 = vadd.f32 0.0, %v806
    %v808 = vpop.f32.mrf.mxu0
    %809 = vdwg.mxu0
    %v810 = vmul.f32 %v807, 0.25
    %v811 = vadd.f32 %v810, %v257
    %v812 = vsel %vm649, %v811, -inf
    %813 = vmax.xlane.f32.xlu0 %v812
    %v814 = vpop.xlane.xlu0 %813
    %v815 = vsub.f32 %v811, %v814
    %v816 = vmul.f32 %v815, 1.442695
    %v817 = vpow.pop %v816
    %v818 = vsel %vm649, %v817, 0.0
    %819 = vadd.xlane.f32.xlu0 %v818
    %v820 = vpop.xlane.xlu0 %819
    %v821 = vrcp.pop %v820
    %v822 = vmul.f32 %v817, %v821
    %v824 = vsel %vm649, %v822, 0
    %826 = vmatprep.subr.mxu0 0.0
    %827 = vmatpush1.msra.mxu0 0.0
    %828 = vmatprep.subr.mxu0 0.0
    %829 = vmatpush1.msra.mxu0 0.0
    %830 = vmatprep.subr.mxu0 0.0
    %831 = vmatpush1.msra.mxu0 0.0
    %832 = vmatprep.subr.mxu0 0.0
    %833 = vmatpush1.msra.mxu0 0.0
    %834 = vmatprep.subr.mxu0 0.0
    %835 = vmatpush1.msra.mxu0 0.0
    %836 = vmatprep.subr.mxu0 0.0
    %837 = vmatpush1.msra.mxu0 0.0
    %838 = vmatprep.subr.mxu0 0.0
    %839 = vmatpush1.msra.mxu0 0.0
    %840 = vmatprep.subr.mxu0 0.0
    %841 = vmatpush1.msra.mxu0 0.0
    %842 = vmatprep.subr.mxu0 0.0
    %843 = vmatpush1.msra.mxu0 0.0
    %844 = vmatprep.subr.mxu0 0.0
    %845 = vmatpush1.msra.mxu0 0.0
    %846 = vmatprep.subr.mxu0 0.0
    %847 = vmatpush1.msra.mxu0 0.0
    %848 = vmatprep.subr.mxu0 0.0
    %849 = vmatpush1.msra.mxu0 0.0
    %850 = vmatprep.subr.mxu0 0.0
    %851 = vmatpush1.msra.mxu0 0.0
    %852 = vmatprep.subr.mxu0 0.0
    %853 = vmatpush1.msra.mxu0 0.0
    %854 = vmatprep.subr.mxu0 0.0
    %855 = vmatpush1.msra.mxu0 0.0
    %856 = vmatprep.subr.mxu0 0.0
    %857 = vmatpush1.msra.mxu0 %v565
    %858 = vmatprep.subr.mxu0 0.0
    %859 = vmatpush2.msra.mxu0 0.0
    %860 = vmatprep.subr.mxu0 0.0
    %861 = vmatpush2.msra.mxu0 0.0
    %862 = vmatprep.subr.mxu0 0.0
    %863 = vmatpush2.msra.mxu0 0.0
    %864 = vmatprep.subr.mxu0 0.0
    %865 = vmatpush2.msra.mxu0 0.0
    %866 = vmatprep.subr.mxu0 0.0
    %867 = vmatpush2.msra.mxu0 0.0
    %868 = vmatprep.subr.mxu0 0.0
    %869 = vmatpush2.msra.mxu0 0.0
    %870 = vmatprep.subr.mxu0 0.0
    %871 = vmatpush2.msra.mxu0 0.0
    %872 = vmatprep.subr.mxu0 0.0
    %873 = vmatpush2.msra.mxu0 0.0
    %874 = vmatprep.subr.mxu0 0.0
    %875 = vmatpush2.msra.mxu0 0.0
    %876 = vmatprep.subr.mxu0 0.0
    %877 = vmatpush2.msra.mxu0 0.0
    %878 = vmatprep.subr.mxu0 0.0
    %879 = vmatpush2.msra.mxu0 0.0
    %880 = vmatprep.subr.mxu0 0.0
    %881 = vmatpush2.msra.mxu0 0.0
    %882 = vmatprep.subr.mxu0 0.0
    %883 = vmatpush2.msra.mxu0 0.0
    %884 = vmatprep.subr.mxu0 0.0
    %885 = vmatpush2.msra.mxu0 0.0
    %886 = vmatprep.subr.mxu0 0.0
    %887 = vmatpush2.msra.mxu0 0.0
    %888 = vmatprep.subr.mxu0 0.0
    %889 = vmatpush2.msra.mxu0 0.0
    %890 = vmatprep.mubr.f32.mxu0 0.0
    %891 = vmatmul.mubr.f32.gmra.mxu0 %v824
    %v892 = vpop.f32.mrf.mxu0
    %v893 = vadd.f32 0.0, %v892
    %v894 = vpop.f32.mrf.mxu0
    %895 = vdwg.mxu0
    %s896 = scalar_lea.vmem %s7, 32
    %v897 = vld [vmem:[%s896] sm:$0xff]
    %v898 = vld [vmem:[%s896 + $0x8] sm:$0xff]
    %v899 = vld [vmem:[%s896 + $0x10] sm:$0xff]
    %v900 = vld [vmem:[%s896 + $0x18] sm:$0xff]
    %s901 = scalar_lea.vmem %s8, 1
    %v902 = vld [vmem:[%s901] sm:$0x1]
    %v904 = vlaneseq
    %v905 = vshrl.u32 %v904, 7
    %v906 = vsub.s32 0, %v905
    %v907 = vrot.slane %v902, %v906
    %909 = vmatprep.subr.mxu0 0.0
    %910 = vmatpush1.msra.mxu0 0.0
    %911 = vmatprep.subr.mxu0 0.0
    %912 = vmatpush1.msra.mxu0 0.0
    %913 = vmatprep.subr.mxu0 0.0
    %914 = vmatpush1.msra.mxu0 0.0
    %915 = vmatprep.subr.mxu0 0.0
    %916 = vmatpush1.msra.mxu0 0.0
    %917 = vmatprep.subr.mxu0 0.0
    %918 = vmatpush1.msra.mxu0 0.0
    %919 = vmatprep.subr.mxu0 0.0
    %920 = vmatpush1.msra.mxu0 0.0
    %921 = vmatprep.subr.mxu0 0.0
    %922 = vmatpush1.msra.mxu0 0.0
    %923 = vmatprep.subr.mxu0 0.0
    %924 = vmatpush1.msra.mxu0 0.0
    %925 = vmatprep.subr.mxu0 0.0
    %926 = vmatpush1.msra.mxu0 0.0
    %927 = vmatprep.subr.mxu0 0.0
    %928 = vmatpush1.msra.mxu0 0.0
    %929 = vmatprep.subr.mxu0 0.0
    %930 = vmatpush1.msra.mxu0 0.0
    %931 = vmatprep.subr.mxu0 0.0
    %932 = vmatpush1.msra.mxu0 0.0
    %933 = vmatprep.subr.mxu0 0.0
    %934 = vmatpush1.msra.mxu0 %v900
    %935 = vmatprep.subr.mxu0 0.0
    %936 = vmatpush1.msra.mxu0 %v899
    %937 = vmatprep.subr.mxu0 0.0
    %938 = vmatpush1.msra.mxu0 %v898
    %939 = vmatprep.subr.mxu0 0.0
    %940 = vmatpush1.msra.mxu0 %v897
    %941 = vmatprep.subr.mxu0 0.0
    %942 = vmatpush2.msra.mxu0 0.0
    %943 = vmatprep.subr.mxu0 0.0
    %944 = vmatpush2.msra.mxu0 0.0
    %945 = vmatprep.subr.mxu0 0.0
    %946 = vmatpush2.msra.mxu0 0.0
    %947 = vmatprep.subr.mxu0 0.0
    %948 = vmatpush2.msra.mxu0 0.0
    %949 = vmatprep.subr.mxu0 0.0
    %950 = vmatpush2.msra.mxu0 0.0
    %951 = vmatprep.subr.mxu0 0.0
    %952 = vmatpush2.msra.mxu0 0.0
    %953 = vmatprep.subr.mxu0 0.0
    %954 = vmatpush2.msra.mxu0 0.0
    %955 = vmatprep.subr.mxu0 0.0
    %956 = vmatpush2.msra.mxu0 0.0
    %957 = vmatprep.subr.mxu0 0.0
    %958 = vmatpush2.msra.mxu0 0.0
    %959 = vmatprep.subr.mxu0 0.0
    %960 = vmatpush2.msra.mxu0 0.0
    %961 = vmatprep.subr.mxu0 0.0
    %962 = vmatpush2.msra.mxu0 0.0
    %963 = vmatprep.subr.mxu0 0.0
    %964 = vmatpush2.msra.mxu0 0.0
    %965 = vmatprep.subr.mxu0 0.0
    %966 = vmatpush2.msra.mxu0 0.0
    %967 = vmatprep.subr.mxu0 0.0
    %968 = vmatpush2.msra.mxu0 0.0
    %969 = vmatprep.subr.mxu0 0.0
    %970 = vmatpush2.msra.mxu0 0.0
    %971 = vmatprep.subr.mxu0 0.0
    %972 = vmatpush2.msra.mxu0 0.0
    %973 = vmatprep.mubr.f32.mxu0 0.0
    %974 = vmatmul.mubr.f32.gmra.mxu0 %v312
    %v975 = vpop.f32.mrf.mxu0
    %v976 = vadd.f32 %v907, %v975
    %v977 = vpop.f32.mrf.mxu0
    %978 = vmatprep.mubr.f32.mxu0 0.0
    %979 = vmatmul.mubr.f32.gmra.mxu0 %v315
    %v980 = vpop.f32.mrf.mxu0
    %v981 = vadd.f32 %v907, %v980
    %v982 = vpop.f32.mrf.mxu0
    %983 = vdwg.mxu0
    %s984 = scalar_lea.vmem %s7, 96
    %v985 = vld [vmem:[%s984] sm:$0xff]
    %v986 = vld [vmem:[%s984 + $0x8] sm:$0xff]
    %v987 = vld [vmem:[%s984 + $0x10] sm:$0xff]
    %v988 = vld [vmem:[%s984 + $0x18] sm:$0xff]
    %s989 = scalar_lea.vmem %s8, 3
    %v990 = vld [vmem:[%s989] sm:$0x1]
    %v992 = vlaneseq
    %v993 = vshrl.u32 %v992, 7
    %v994 = vsub.s32 0, %v993
    %v995 = vrot.slane %v990, %v994
    %997 = vmatprep.subr.mxu0 0.0
    %998 = vmatpush1.msra.mxu0 0.0
    %999 = vmatprep.subr.mxu0 0.0
    %1000 = vmatpush1.msra.mxu0 0.0
    %1001 = vmatprep.subr.mxu0 0.0
    %1002 = vmatpush1.msra.mxu0 0.0
    %1003 = vmatprep.subr.mxu0 0.0
    %1004 = vmatpush1.msra.mxu0 0.0
    %1005 = vmatprep.subr.mxu0 0.0
    %1006 = vmatpush1.msra.mxu0 0.0
    %1007 = vmatprep.subr.mxu0 0.0
    %1008 = vmatpush1.msra.mxu0 0.0
    %1009 = vmatprep.subr.mxu0 0.0
    %1010 = vmatpush1.msra.mxu0 0.0
    %1011 = vmatprep.subr.mxu0 0.0
    %1012 = vmatpush1.msra.mxu0 0.0
    %1013 = vmatprep.subr.mxu0 0.0
    %1014 = vmatpush1.msra.mxu0 0.0
    %1015 = vmatprep.subr.mxu0 0.0
    %1016 = vmatpush1.msra.mxu0 0.0
    %1017 = vmatprep.subr.mxu0 0.0
    %1018 = vmatpush1.msra.mxu0 0.0
    %1019 = vmatprep.subr.mxu0 0.0
    %1020 = vmatpush1.msra.mxu0 0.0
    %1021 = vmatprep.subr.mxu0 0.0
    %1022 = vmatpush1.msra.mxu0 %v988
    %1023 = vmatprep.subr.mxu0 0.0
    %1024 = vmatpush1.msra.mxu0 %v987
    %1025 = vmatprep.subr.mxu0 0.0
    %1026 = vmatpush1.msra.mxu0 %v986
    %1027 = vmatprep.subr.mxu0 0.0
    %1028 = vmatpush1.msra.mxu0 %v985
    %1029 = vmatprep.subr.mxu0 0.0
    %1030 = vmatpush2.msra.mxu0 0.0
    %1031 = vmatprep.subr.mxu0 0.0
    %1032 = vmatpush2.msra.mxu0 0.0
    %1033 = vmatprep.subr.mxu0 0.0
    %1034 = vmatpush2.msra.mxu0 0.0
    %1035 = vmatprep.subr.mxu0 0.0
    %1036 = vmatpush2.msra.mxu0 0.0
    %1037 = vmatprep.subr.mxu0 0.0
    %1038 = vmatpush2.msra.mxu0 0.0
    %1039 = vmatprep.subr.mxu0 0.0
    %1040 = vmatpush2.msra.mxu0 0.0
    %1041 = vmatprep.subr.mxu0 0.0
    %1042 = vmatpush2.msra.mxu0 0.0
    %1043 = vmatprep.subr.mxu0 0.0
    %1044 = vmatpush2.msra.mxu0 0.0
    %1045 = vmatprep.subr.mxu0 0.0
    %1046 = vmatpush2.msra.mxu0 0.0
    %1047 = vmatprep.subr.mxu0 0.0
    %1048 = vmatpush2.msra.mxu0 0.0
    %1049 = vmatprep.subr.mxu0 0.0
    %1050 = vmatpush2.msra.mxu0 0.0
    %1051 = vmatprep.subr.mxu0 0.0
    %1052 = vmatpush2.msra.mxu0 0.0
    %1053 = vmatprep.subr.mxu0 0.0
    %1054 = vmatpush2.msra.mxu0 0.0
    %1055 = vmatprep.subr.mxu0 0.0
    %1056 = vmatpush2.msra.mxu0 0.0
    %1057 = vmatprep.subr.mxu0 0.0
    %1058 = vmatpush2.msra.mxu0 0.0
    %1059 = vmatprep.subr.mxu0 0.0
    %1060 = vmatpush2.msra.mxu0 0.0
    %1061 = vmatprep.mubr.f32.mxu0 0.0
    %1062 = vmatmul.mubr.f32.gmra.mxu0 %v312
    %v1063 = vpop.f32.mrf.mxu0
    %v1064 = vadd.f32 %v995, %v1063
    %v1065 = vpop.f32.mrf.mxu0
    %1066 = vmatprep.mubr.f32.mxu0 0.0
    %1067 = vmatmul.mubr.f32.gmra.mxu0 %v315
    %v1068 = vpop.f32.mrf.mxu0
    %v1069 = vadd.f32 %v995, %v1068
    %v1070 = vpop.f32.mrf.mxu0
    %1071 = vdwg.mxu0
    %s1072 = scalar_lea.vmem %s7, 160
    %v1073 = vld [vmem:[%s1072] sm:$0xff]
    %v1074 = vld [vmem:[%s1072 + $0x8] sm:$0xff]
    %v1075 = vld [vmem:[%s1072 + $0x10] sm:$0xff]
    %v1076 = vld [vmem:[%s1072 + $0x18] sm:$0xff]
    %s1077 = scalar_lea.vmem %s8, 5
    %v1078 = vld [vmem:[%s1077] sm:$0x1]
    %v1080 = vlaneseq
    %v1081 = vshrl.u32 %v1080, 7
    %v1082 = vsub.s32 0, %v1081
    %v1083 = vrot.slane %v1078, %v1082
    %1085 = vmatprep.subr.mxu0 0.0
    %1086 = vmatpush1.msra.mxu0 0.0
    %1087 = vmatprep.subr.mxu0 0.0
    %1088 = vmatpush1.msra.mxu0 0.0
    %1089 = vmatprep.subr.mxu0 0.0
    %1090 = vmatpush1.msra.mxu0 0.0
    %1091 = vmatprep.subr.mxu0 0.0
    %1092 = vmatpush1.msra.mxu0 0.0
    %1093 = vmatprep.subr.mxu0 0.0
    %1094 = vmatpush1.msra.mxu0 0.0
    %1095 = vmatprep.subr.mxu0 0.0
    %1096 = vmatpush1.msra.mxu0 0.0
    %1097 = vmatprep.subr.mxu0 0.0
    %1098 = vmatpush1.msra.mxu0 0.0
    %1099 = vmatprep.subr.mxu0 0.0
    %1100 = vmatpush1.msra.mxu0 0.0
    %1101 = vmatprep.subr.mxu0 0.0
    %1102 = vmatpush1.msra.mxu0 0.0
    %1103 = vmatprep.subr.mxu0 0.0
    %1104 = vmatpush1.msra.mxu0 0.0
    %1105 = vmatprep.subr.mxu0 0.0
    %1106 = vmatpush1.msra.mxu0 0.0
    %1107 = vmatprep.subr.mxu0 0.0
    %1108 = vmatpush1.msra.mxu0 0.0
    %1109 = vmatprep.subr.mxu0 0.0
    %1110 = vmatpush1.msra.mxu0 %v1076
    %1111 = vmatprep.subr.mxu0 0.0
    %1112 = vmatpush1.msra.mxu0 %v1075
    %1113 = vmatprep.subr.mxu0 0.0
    %1114 = vmatpush1.msra.mxu0 %v1074
    %1115 = vmatprep.subr.mxu0 0.0
    %1116 = vmatpush1.msra.mxu0 %v1073
    %1117 = vmatprep.subr.mxu0 0.0
    %1118 = vmatpush2.msra.mxu0 0.0
    %1119 = vmatprep.subr.mxu0 0.0
    %1120 = vmatpush2.msra.mxu0 0.0
    %1121 = vmatprep.subr.mxu0 0.0
    %1122 = vmatpush2.msra.mxu0 0.0
    %1123 = vmatprep.subr.mxu0 0.0
    %1124 = vmatpush2.msra.mxu0 0.0
    %1125 = vmatprep.subr.mxu0 0.0
    %1126 = vmatpush2.msra.mxu0 0.0
    %1127 = vmatprep.subr.mxu0 0.0
    %1128 = vmatpush2.msra.mxu0 0.0
    %1129 = vmatprep.subr.mxu0 0.0
    %1130 = vmatpush2.msra.mxu0 0.0
    %1131 = vmatprep.subr.mxu0 0.0
    %1132 = vmatpush2.msra.mxu0 0.0
    %1133 = vmatprep.subr.mxu0 0.0
    %1134 = vmatpush2.msra.mxu0 0.0
    %1135 = vmatprep.subr.mxu0 0.0
    %1136 = vmatpush2.msra.mxu0 0.0
    %1137 = vmatprep.subr.mxu0 0.0
    %1138 = vmatpush2.msra.mxu0 0.0
    %1139 = vmatprep.subr.mxu0 0.0
    %1140 = vmatpush2.msra.mxu0 0.0
    %1141 = vmatprep.subr.mxu0 0.0
    %1142 = vmatpush2.msra.mxu0 0.0
    %1143 = vmatprep.subr.mxu0 0.0
    %1144 = vmatpush2.msra.mxu0 0.0
    %1145 = vmatprep.subr.mxu0 0.0
    %1146 = vmatpush2.msra.mxu0 0.0
    %1147 = vmatprep.subr.mxu0 0.0
    %1148 = vmatpush2.msra.mxu0 0.0
    %1149 = vmatprep.mubr.f32.mxu0 0.0
    %1150 = vmatmul.mubr.f32.gmra.mxu0 %v312
    %v1151 = vpop.f32.mrf.mxu0
    %v1152 = vadd.f32 %v1083, %v1151
    %v1153 = vpop.f32.mrf.mxu0
    %1154 = vmatprep.mubr.f32.mxu0 0.0
    %1155 = vmatmul.mubr.f32.gmra.mxu0 %v315
    %v1156 = vpop.f32.mrf.mxu0
    %v1157 = vadd.f32 %v1083, %v1156
    %v1158 = vpop.f32.mrf.mxu0
    %1159 = vdwg.mxu0
    %s1160 = scalar_lea.vmem %s9, 16
    %v1161 = vld [vmem:[%s1160] sm:$0xff]
    %v1162 = vld [vmem:[%s1160 + $0x8] sm:$0xff]
    %v1164 = vsel %vm570, %v976, 0
    %v1167 = vsel %vm570, %v1064, 0
    %1169 = vmatprep.subr.mxu0 0.0
    %1170 = vmatpush1.xpose.msra.mxu0 0.0
    %1171 = vmatprep.subr.mxu0 0.0
    %1172 = vmatpush1.xpose.msra.mxu0 0.0
    %1173 = vmatprep.subr.mxu0 0.0
    %1174 = vmatpush1.xpose.msra.mxu0 0.0
    %1175 = vmatprep.subr.mxu0 0.0
    %1176 = vmatpush1.xpose.msra.mxu0 0.0
    %1177 = vmatprep.subr.mxu0 0.0
    %1178 = vmatpush1.xpose.msra.mxu0 0.0
    %1179 = vmatprep.subr.mxu0 0.0
    %1180 = vmatpush1.xpose.msra.mxu0 0.0
    %1181 = vmatprep.subr.mxu0 0.0
    %1182 = vmatpush1.xpose.msra.mxu0 0.0
    %1183 = vmatprep.subr.mxu0 0.0
    %1184 = vmatpush1.xpose.msra.mxu0 0.0
    %1185 = vmatprep.subr.mxu0 0.0
    %1186 = vmatpush1.xpose.msra.mxu0 0.0
    %1187 = vmatprep.subr.mxu0 0.0
    %1188 = vmatpush1.xpose.msra.mxu0 0.0
    %1189 = vmatprep.subr.mxu0 0.0
    %1190 = vmatpush1.xpose.msra.mxu0 0.0
    %1191 = vmatprep.subr.mxu0 0.0
    %1192 = vmatpush1.xpose.msra.mxu0 0.0
    %1193 = vmatprep.subr.mxu0 0.0
    %1194 = vmatpush1.xpose.msra.mxu0 0.0
    %1195 = vmatprep.subr.mxu0 0.0
    %1196 = vmatpush1.xpose.msra.mxu0 0.0
    %1197 = vmatprep.subr.mxu0 0.0
    %1198 = vmatpush1.xpose.msra.mxu0 0.0
    %1199 = vmatprep.subr.mxu0 0.0
    %1200 = vmatpush1.xpose.msra.mxu0 %v1167
    %1201 = vmatprep.subr.mxu0 0.0
    %1202 = vmatpush2.xpose.msra.mxu0 0.0
    %1203 = vmatprep.subr.mxu0 0.0
    %1204 = vmatpush2.xpose.msra.mxu0 0.0
    %1205 = vmatprep.subr.mxu0 0.0
    %1206 = vmatpush2.xpose.msra.mxu0 0.0
    %1207 = vmatprep.subr.mxu0 0.0
    %1208 = vmatpush2.xpose.msra.mxu0 0.0
    %1209 = vmatprep.subr.mxu0 0.0
    %1210 = vmatpush2.xpose.msra.mxu0 0.0
    %1211 = vmatprep.subr.mxu0 0.0
    %1212 = vmatpush2.xpose.msra.mxu0 0.0
    %1213 = vmatprep.subr.mxu0 0.0
    %1214 = vmatpush2.xpose.msra.mxu0 0.0
    %1215 = vmatprep.subr.mxu0 0.0
    %1216 = vmatpush2.xpose.msra.mxu0 0.0
    %1217 = vmatprep.subr.mxu0 0.0
    %1218 = vmatpush2.xpose.msra.mxu0 0.0
    %1219 = vmatprep.subr.mxu0 0.0
    %1220 = vmatpush2.xpose.msra.mxu0 0.0
    %1221 = vmatprep.subr.mxu0 0.0
    %1222 = vmatpush2.xpose.msra.mxu0 0.0
    %1223 = vmatprep.subr.mxu0 0.0
    %1224 = vmatpush2.xpose.msra.mxu0 0.0
    %1225 = vmatprep.subr.mxu0 0.0
    %1226 = vmatpush2.xpose.msra.mxu0 0.0
    %1227 = vmatprep.subr.mxu0 0.0
    %1228 = vmatpush2.xpose.msra.mxu0 0.0
    %1229 = vmatprep.subr.mxu0 0.0
    %1230 = vmatpush2.xpose.msra.mxu0 0.0
    %1231 = vmatprep.subr.mxu0 0.0
    %1232 = vmatpush2.xpose.msra.mxu0 0.0
    %1233 = vmatprep.mubr.f32.mxu0 0.0
    %1234 = vmatmul.mubr.f32.gmra.mxu0 %v1164
    %v1235 = vpop.f32.mrf.mxu0
    %v1236 = vadd.f32 0.0, %v1235
    %v1237 = vpop.f32.mrf.mxu0
    %1238 = vdwg.mxu0
    %v1239 = vmul.f32 %v1236, 0.25
    %v1240 = vadd.f32 %v1239, %v257
    %v1241 = vsel %vm649, %v1240, -inf
    %1242 = vmax.xlane.f32.xlu0 %v1241
    %v1243 = vpop.xlane.xlu0 %1242
    %v1244 = vsub.f32 %v1240, %v1243
    %v1245 = vmul.f32 %v1244, 1.442695
    %v1246 = vpow.pop %v1245
    %v1247 = vsel %vm649, %v1246, 0.0
    %1248 = vadd.xlane.f32.xlu0 %v1247
    %v1249 = vpop.xlane.xlu0 %1248
    %v1250 = vrcp.pop %v1249
    %v1251 = vmul.f32 %v1246, %v1250
    %v1253 = vsel %vm649, %v1251, 0
    %1255 = vmatprep.subr.mxu0 0.0
    %1256 = vmatpush1.msra.mxu0 0.0
    %1257 = vmatprep.subr.mxu0 0.0
    %1258 = vmatpush1.msra.mxu0 0.0
    %1259 = vmatprep.subr.mxu0 0.0
    %1260 = vmatpush1.msra.mxu0 0.0
    %1261 = vmatprep.subr.mxu0 0.0
    %1262 = vmatpush1.msra.mxu0 0.0
    %1263 = vmatprep.subr.mxu0 0.0
    %1264 = vmatpush1.msra.mxu0 0.0
    %1265 = vmatprep.subr.mxu0 0.0
    %1266 = vmatpush1.msra.mxu0 0.0
    %1267 = vmatprep.subr.mxu0 0.0
    %1268 = vmatpush1.msra.mxu0 0.0
    %1269 = vmatprep.subr.mxu0 0.0
    %1270 = vmatpush1.msra.mxu0 0.0
    %1271 = vmatprep.subr.mxu0 0.0
    %1272 = vmatpush1.msra.mxu0 0.0
    %1273 = vmatprep.subr.mxu0 0.0
    %1274 = vmatpush1.msra.mxu0 0.0
    %1275 = vmatprep.subr.mxu0 0.0
    %1276 = vmatpush1.msra.mxu0 0.0
    %1277 = vmatprep.subr.mxu0 0.0
    %1278 = vmatpush1.msra.mxu0 0.0
    %1279 = vmatprep.subr.mxu0 0.0
    %1280 = vmatpush1.msra.mxu0 0.0
    %1281 = vmatprep.subr.mxu0 0.0
    %1282 = vmatpush1.msra.mxu0 0.0
    %1283 = vmatprep.subr.mxu0 0.0
    %1284 = vmatpush1.msra.mxu0 0.0
    %1285 = vmatprep.subr.mxu0 0.0
    %1286 = vmatpush1.msra.mxu0 %v1152
    %1287 = vmatprep.subr.mxu0 0.0
    %1288 = vmatpush2.msra.mxu0 0.0
    %1289 = vmatprep.subr.mxu0 0.0
    %1290 = vmatpush2.msra.mxu0 0.0
    %1291 = vmatprep.subr.mxu0 0.0
    %1292 = vmatpush2.msra.mxu0 0.0
    %1293 = vmatprep.subr.mxu0 0.0
    %1294 = vmatpush2.msra.mxu0 0.0
    %1295 = vmatprep.subr.mxu0 0.0
    %1296 = vmatpush2.msra.mxu0 0.0
    %1297 = vmatprep.subr.mxu0 0.0
    %1298 = vmatpush2.msra.mxu0 0.0
    %1299 = vmatprep.subr.mxu0 0.0
    %1300 = vmatpush2.msra.mxu0 0.0
    %1301 = vmatprep.subr.mxu0 0.0
    %1302 = vmatpush2.msra.mxu0 0.0
    %1303 = vmatprep.subr.mxu0 0.0
    %1304 = vmatpush2.msra.mxu0 0.0
    %1305 = vmatprep.subr.mxu0 0.0
    %1306 = vmatpush2.msra.mxu0 0.0
    %1307 = vmatprep.subr.mxu0 0.0
    %1308 = vmatpush2.msra.mxu0 0.0
    %1309 = vmatprep.subr.mxu0 0.0
    %1310 = vmatpush2.msra.mxu0 0.0
    %1311 = vmatprep.subr.mxu0 0.0
    %1312 = vmatpush2.msra.mxu0 0.0
    %1313 = vmatprep.subr.mxu0 0.0
    %1314 = vmatpush2.msra.mxu0 0.0
    %1315 = vmatprep.subr.mxu0 0.0
    %1316 = vmatpush2.msra.mxu0 0.0
    %1317 = vmatprep.subr.mxu0 0.0
    %1318 = vmatpush2.msra.mxu0 0.0
    %1319 = vmatprep.mubr.f32.mxu0 0.0
    %1320 = vmatmul.mubr.f32.gmra.mxu0 %v1253
    %v1321 = vpop.f32.mrf.mxu0
    %v1322 = vadd.f32 0.0, %v1321
    %v1323 = vpop.f32.mrf.mxu0
    %1324 = vdwg.mxu0
    %v1326 = vsel %vm570, %v1322, 0
    %1328 = vmatprep.subr.mxu0 0.0
    %1329 = vmatpush1.msra.mxu0 0.0
    %1330 = vmatprep.subr.mxu0 0.0
    %1331 = vmatpush1.msra.mxu0 0.0
    %1332 = vmatprep.subr.mxu0 0.0
    %1333 = vmatpush1.msra.mxu0 0.0
    %1334 = vmatprep.subr.mxu0 0.0
    %1335 = vmatpush1.msra.mxu0 0.0
    %1336 = vmatprep.subr.mxu0 0.0
    %1337 = vmatpush1.msra.mxu0 0.0
    %1338 = vmatprep.subr.mxu0 0.0
    %1339 = vmatpush1.msra.mxu0 0.0
    %1340 = vmatprep.subr.mxu0 0.0
    %1341 = vmatpush1.msra.mxu0 0.0
    %1342 = vmatprep.subr.mxu0 0.0
    %1343 = vmatpush1.msra.mxu0 0.0
    %1344 = vmatprep.subr.mxu0 0.0
    %1345 = vmatpush1.msra.mxu0 0.0
    %1346 = vmatprep.subr.mxu0 0.0
    %1347 = vmatpush1.msra.mxu0 0.0
    %1348 = vmatprep.subr.mxu0 0.0
    %1349 = vmatpush1.msra.mxu0 0.0
    %1350 = vmatprep.subr.mxu0 0.0
    %1351 = vmatpush1.msra.mxu0 0.0
    %1352 = vmatprep.subr.mxu0 0.0
    %1353 = vmatpush1.msra.mxu0 0.0
    %1354 = vmatprep.subr.mxu0 0.0
    %1355 = vmatpush1.msra.mxu0 0.0
    %1356 = vmatprep.subr.mxu0 0.0
    %1357 = vmatpush1.msra.mxu0 %v1162
    %1358 = vmatprep.subr.mxu0 0.0
    %1359 = vmatpush1.msra.mxu0 %v1161
    %1360 = vmatprep.subr.mxu0 0.0
    %1361 = vmatpush2.msra.mxu0 0.0
    %1362 = vmatprep.subr.mxu0 0.0
    %1363 = vmatpush2.msra.mxu0 0.0
    %1364 = vmatprep.subr.mxu0 0.0
    %1365 = vmatpush2.msra.mxu0 0.0
    %1366 = vmatprep.subr.mxu0 0.0
    %1367 = vmatpush2.msra.mxu0 0.0
    %1368 = vmatprep.subr.mxu0 0.0
    %1369 = vmatpush2.msra.mxu0 0.0
    %1370 = vmatprep.subr.mxu0 0.0
    %1371 = vmatpush2.msra.mxu0 0.0
    %1372 = vmatprep.subr.mxu0 0.0
    %1373 = vmatpush2.msra.mxu0 0.0
    %1374 = vmatprep.subr.mxu0 0.0
    %1375 = vmatpush2.msra.mxu0 0.0
    %1376 = vmatprep.subr.mxu0 0.0
    %1377 = vmatpush2.msra.mxu0 0.0
    %1378 = vmatprep.subr.mxu0 0.0
    %1379 = vmatpush2.msra.mxu0 0.0
    %1380 = vmatprep.subr.mxu0 0.0
    %1381 = vmatpush2.msra.mxu0 0.0
    %1382 = vmatprep.subr.mxu0 0.0
    %1383 = vmatpush2.msra.mxu0 0.0
    %1384 = vmatprep.subr.mxu0 0.0
    %1385 = vmatpush2.msra.mxu0 0.0
    %1386 = vmatprep.subr.mxu0 0.0
    %1387 = vmatpush2.msra.mxu0 0.0
    %1388 = vmatprep.subr.mxu0 0.0
    %1389 = vmatpush2.msra.mxu0 0.0
    %1390 = vmatprep.subr.mxu0 0.0
    %1391 = vmatpush2.msra.mxu0 0.0
    %1392 = vmatprep.mubr.f32.mxu0 0.0
    %1393 = vmatmul.mubr.f32.gmra.mxu0 %v1326
    %v1394 = vpop.f32.mrf.mxu0
    %v1395 = vadd.f32 0.0, %v1394
    %v1396 = vpop.f32.mrf.mxu0
    %1397 = vdwg.mxu0
    %v1399 = vsel %vm570, %v731, 0
    %1401 = vmatprep.subr.mxu0 0.0
    %1402 = vmatpush1.msra.mxu0 0.0
    %1403 = vmatprep.subr.mxu0 0.0
    %1404 = vmatpush1.msra.mxu0 0.0
    %1405 = vmatprep.subr.mxu0 0.0
    %1406 = vmatpush1.msra.mxu0 0.0
    %1407 = vmatprep.subr.mxu0 0.0
    %1408 = vmatpush1.msra.mxu0 0.0
    %1409 = vmatprep.subr.mxu0 0.0
    %1410 = vmatpush1.msra.mxu0 0.0
    %1411 = vmatprep.subr.mxu0 0.0
    %1412 = vmatpush1.msra.mxu0 0.0
    %1413 = vmatprep.subr.mxu0 0.0
    %1414 = vmatpush1.msra.mxu0 0.0
    %1415 = vmatprep.subr.mxu0 0.0
    %1416 = vmatpush1.msra.mxu0 0.0
    %1417 = vmatprep.subr.mxu0 0.0
    %1418 = vmatpush1.msra.mxu0 0.0
    %1419 = vmatprep.subr.mxu0 0.0
    %1420 = vmatpush1.msra.mxu0 0.0
    %1421 = vmatprep.subr.mxu0 0.0
    %1422 = vmatpush1.msra.mxu0 0.0
    %1423 = vmatprep.subr.mxu0 0.0
    %1424 = vmatpush1.msra.mxu0 0.0
    %1425 = vmatprep.subr.mxu0 0.0
    %1426 = vmatpush1.msra.mxu0 0.0
    %1427 = vmatprep.subr.mxu0 0.0
    %1428 = vmatpush1.msra.mxu0 0.0
    %1429 = vmatprep.subr.mxu0 0.0
    %1430 = vmatpush1.msra.mxu0 %v569
    %1431 = vmatprep.subr.mxu0 0.0
    %1432 = vmatpush1.msra.mxu0 %v568
    %1433 = vmatprep.subr.mxu0 0.0
    %1434 = vmatpush2.msra.mxu0 0.0
    %1435 = vmatprep.subr.mxu0 0.0
    %1436 = vmatpush2.msra.mxu0 0.0
    %1437 = vmatprep.subr.mxu0 0.0
    %1438 = vmatpush2.msra.mxu0 0.0
    %1439 = vmatprep.subr.mxu0 0.0
    %1440 = vmatpush2.msra.mxu0 0.0
    %1441 = vmatprep.subr.mxu0 0.0
    %1442 = vmatpush2.msra.mxu0 0.0
    %1443 = vmatprep.subr.mxu0 0.0
    %1444 = vmatpush2.msra.mxu0 0.0
    %1445 = vmatprep.subr.mxu0 0.0
    %1446 = vmatpush2.msra.mxu0 0.0
    %1447 = vmatprep.subr.mxu0 0.0
    %1448 = vmatpush2.msra.mxu0 0.0
    %1449 = vmatprep.subr.mxu0 0.0
    %1450 = vmatpush2.msra.mxu0 0.0
    %1451 = vmatprep.subr.mxu0 0.0
    %1452 = vmatpush2.msra.mxu0 0.0
    %1453 = vmatprep.subr.mxu0 0.0
    %1454 = vmatpush2.msra.mxu0 0.0
    %1455 = vmatprep.subr.mxu0 0.0
    %1456 = vmatpush2.msra.mxu0 0.0
    %1457 = vmatprep.subr.mxu0 0.0
    %1458 = vmatpush2.msra.mxu0 0.0
    %1459 = vmatprep.subr.mxu0 0.0
    %1460 = vmatpush2.msra.mxu0 0.0
    %1461 = vmatprep.subr.mxu0 0.0
    %1462 = vmatpush2.msra.mxu0 0.0
    %1463 = vmatprep.subr.mxu0 0.0
    %1464 = vmatpush2.msra.mxu0 0.0
    %1465 = vmatprep.mubr.f32.mxu0 0.0
    %1466 = vmatmul.mubr.f32.gmra.mxu0 %v1399
    %v1467 = vpop.f32.mrf.mxu0
    %v1468 = vadd.f32 %v1395, %v1467
    %v1469 = vpop.f32.mrf.mxu0
    %1470 = vdwg.mxu0
    %v1472 = vsel %vm570, %v981, 0
    %v1475 = vsel %vm570, %v1069, 0
    %1477 = vmatprep.subr.mxu0 0.0
    %1478 = vmatpush1.xpose.msra.mxu0 0.0
    %1479 = vmatprep.subr.mxu0 0.0
    %1480 = vmatpush1.xpose.msra.mxu0 0.0
    %1481 = vmatprep.subr.mxu0 0.0
    %1482 = vmatpush1.xpose.msra.mxu0 0.0
    %1483 = vmatprep.subr.mxu0 0.0
    %1484 = vmatpush1.xpose.msra.mxu0 0.0
    %1485 = vmatprep.subr.mxu0 0.0
    %1486 = vmatpush1.xpose.msra.mxu0 0.0
    %1487 = vmatprep.subr.mxu0 0.0
    %1488 = vmatpush1.xpose.msra.mxu0 0.0
    %1489 = vmatprep.subr.mxu0 0.0
    %1490 = vmatpush1.xpose.msra.mxu0 0.0
    %1491 = vmatprep.subr.mxu0 0.0
    %1492 = vmatpush1.xpose.msra.mxu0 0.0
    %1493 = vmatprep.subr.mxu0 0.0
    %1494 = vmatpush1.xpose.msra.mxu0 0.0
    %1495 = vmatprep.subr.mxu0 0.0
    %1496 = vmatpush1.xpose.msra.mxu0 0.0
    %1497 = vmatprep.subr.mxu0 0.0
    %1498 = vmatpush1.xpose.msra.mxu0 0.0
    %1499 = vmatprep.subr.mxu0 0.0
    %1500 = vmatpush1.xpose.msra.mxu0 0.0
    %1501 = vmatprep.subr.mxu0 0.0
    %1502 = vmatpush1.xpose.msra.mxu0 0.0
    %1503 = vmatprep.subr.mxu0 0.0
    %1504 = vmatpush1.xpose.msra.mxu0 0.0
    %1505 = vmatprep.subr.mxu0 0.0
    %1506 = vmatpush1.xpose.msra.mxu0 0.0
    %1507 = vmatprep.subr.mxu0 0.0
    %1508 = vmatpush1.xpose.msra.mxu0 %v1475
    %1509 = vmatprep.subr.mxu0 0.0
    %1510 = vmatpush2.xpose.msra.mxu0 0.0
    %1511 = vmatprep.subr.mxu0 0.0
    %1512 = vmatpush2.xpose.msra.mxu0 0.0
    %1513 = vmatprep.subr.mxu0 0.0
    %1514 = vmatpush2.xpose.msra.mxu0 0.0
    %1515 = vmatprep.subr.mxu0 0.0
    %1516 = vmatpush2.xpose.msra.mxu0 0.0
    %1517 = vmatprep.subr.mxu0 0.0
    %1518 = vmatpush2.xpose.msra.mxu0 0.0
    %1519 = vmatprep.subr.mxu0 0.0
    %1520 = vmatpush2.xpose.msra.mxu0 0.0
    %1521 = vmatprep.subr.mxu0 0.0
    %1522 = vmatpush2.xpose.msra.mxu0 0.0
    %1523 = vmatprep.subr.mxu0 0.0
    %1524 = vmatpush2.xpose.msra.mxu0 0.0
    %1525 = vmatprep.subr.mxu0 0.0
    %1526 = vmatpush2.xpose.msra.mxu0 0.0
    %1527 = vmatprep.subr.mxu0 0.0
    %1528 = vmatpush2.xpose.msra.mxu0 0.0
    %1529 = vmatprep.subr.mxu0 0.0
    %1530 = vmatpush2.xpose.msra.mxu0 0.0
    %1531 = vmatprep.subr.mxu0 0.0
    %1532 = vmatpush2.xpose.msra.mxu0 0.0
    %1533 = vmatprep.subr.mxu0 0.0
    %1534 = vmatpush2.xpose.msra.mxu0 0.0
    %1535 = vmatprep.subr.mxu0 0.0
    %1536 = vmatpush2.xpose.msra.mxu0 0.0
    %1537 = vmatprep.subr.mxu0 0.0
    %1538 = vmatpush2.xpose.msra.mxu0 0.0
    %1539 = vmatprep.subr.mxu0 0.0
    %1540 = vmatpush2.xpose.msra.mxu0 0.0
    %1541 = vmatprep.mubr.f32.mxu0 0.0
    %1542 = vmatmul.mubr.f32.gmra.mxu0 %v1472
    %v1543 = vpop.f32.mrf.mxu0
    %v1544 = vadd.f32 0.0, %v1543
    %v1545 = vpop.f32.mrf.mxu0
    %1546 = vdwg.mxu0
    %v1547 = vmul.f32 %v1544, 0.25
    %v1548 = vadd.f32 %v1547, %v257
    %v1549 = vsel %vm649, %v1548, -inf
    %1550 = vmax.xlane.f32.xlu0 %v1549
    %v1551 = vpop.xlane.xlu0 %1550
    %v1552 = vsub.f32 %v1548, %v1551
    %v1553 = vmul.f32 %v1552, 1.442695
    %v1554 = vpow.pop %v1553
    %v1555 = vsel %vm649, %v1554, 0.0
    %1556 = vadd.xlane.f32.xlu0 %v1555
    %v1557 = vpop.xlane.xlu0 %1556
    %v1558 = vrcp.pop %v1557
    %v1559 = vmul.f32 %v1554, %v1558
    %v1561 = vsel %vm649, %v1559, 0
    %1563 = vmatprep.subr.mxu0 0.0
    %1564 = vmatpush1.msra.mxu0 0.0
    %1565 = vmatprep.subr.mxu0 0.0
    %1566 = vmatpush1.msra.mxu0 0.0
    %1567 = vmatprep.subr.mxu0 0.0
    %1568 = vmatpush1.msra.mxu0 0.0
    %1569 = vmatprep.subr.mxu0 0.0
    %1570 = vmatpush1.msra.mxu0 0.0
    %1571 = vmatprep.subr.mxu0 0.0
    %1572 = vmatpush1.msra.mxu0 0.0
    %1573 = vmatprep.subr.mxu0 0.0
    %1574 = vmatpush1.msra.mxu0 0.0
    %1575 = vmatprep.subr.mxu0 0.0
    %1576 = vmatpush1.msra.mxu0 0.0
    %1577 = vmatprep.subr.mxu0 0.0
    %1578 = vmatpush1.msra.mxu0 0.0
    %1579 = vmatprep.subr.mxu0 0.0
    %1580 = vmatpush1.msra.mxu0 0.0
    %1581 = vmatprep.subr.mxu0 0.0
    %1582 = vmatpush1.msra.mxu0 0.0
    %1583 = vmatprep.subr.mxu0 0.0
    %1584 = vmatpush1.msra.mxu0 0.0
    %1585 = vmatprep.subr.mxu0 0.0
    %1586 = vmatpush1.msra.mxu0 0.0
    %1587 = vmatprep.subr.mxu0 0.0
    %1588 = vmatpush1.msra.mxu0 0.0
    %1589 = vmatprep.subr.mxu0 0.0
    %1590 = vmatpush1.msra.mxu0 0.0
    %1591 = vmatprep.subr.mxu0 0.0
    %1592 = vmatpush1.msra.mxu0 0.0
    %1593 = vmatprep.subr.mxu0 0.0
    %1594 = vmatpush1.msra.mxu0 %v1157
    %1595 = vmatprep.subr.mxu0 0.0
    %1596 = vmatpush2.msra.mxu0 0.0
    %1597 = vmatprep.subr.mxu0 0.0
    %1598 = vmatpush2.msra.mxu0 0.0
    %1599 = vmatprep.subr.mxu0 0.0
    %1600 = vmatpush2.msra.mxu0 0.0
    %1601 = vmatprep.subr.mxu0 0.0
    %1602 = vmatpush2.msra.mxu0 0.0
    %1603 = vmatprep.subr.mxu0 0.0
    %1604 = vmatpush2.msra.mxu0 0.0
    %1605 = vmatprep.subr.mxu0 0.0
    %1606 = vmatpush2.msra.mxu0 0.0
    %1607 = vmatprep.subr.mxu0 0.0
    %1608 = vmatpush2.msra.mxu0 0.0
    %1609 = vmatprep.subr.mxu0 0.0
    %1610 = vmatpush2.msra.mxu0 0.0
    %1611 = vmatprep.subr.mxu0 0.0
    %1612 = vmatpush2.msra.mxu0 0.0
    %1613 = vmatprep.subr.mxu0 0.0
    %1614 = vmatpush2.msra.mxu0 0.0
    %1615 = vmatprep.subr.mxu0 0.0
    %1616 = vmatpush2.msra.mxu0 0.0
    %1617 = vmatprep.subr.mxu0 0.0
    %1618 = vmatpush2.msra.mxu0 0.0
    %1619 = vmatprep.subr.mxu0 0.0
    %1620 = vmatpush2.msra.mxu0 0.0
    %1621 = vmatprep.subr.mxu0 0.0
    %1622 = vmatpush2.msra.mxu0 0.0
    %1623 = vmatprep.subr.mxu0 0.0
    %1624 = vmatpush2.msra.mxu0 0.0
    %1625 = vmatprep.subr.mxu0 0.0
    %1626 = vmatpush2.msra.mxu0 0.0
    %1627 = vmatprep.mubr.f32.mxu0 0.0
    %1628 = vmatmul.mubr.f32.gmra.mxu0 %v1561
    %v1629 = vpop.f32.mrf.mxu0
    %v1630 = vadd.f32 0.0, %v1629
    %v1631 = vpop.f32.mrf.mxu0
    %1632 = vdwg.mxu0
    %v1634 = vsel %vm570, %v1630, 0
    %1636 = vmatprep.subr.mxu0 0.0
    %1637 = vmatpush1.msra.mxu0 0.0
    %1638 = vmatprep.subr.mxu0 0.0
    %1639 = vmatpush1.msra.mxu0 0.0
    %1640 = vmatprep.subr.mxu0 0.0
    %1641 = vmatpush1.msra.mxu0 0.0
    %1642 = vmatprep.subr.mxu0 0.0
    %1643 = vmatpush1.msra.mxu0 0.0
    %1644 = vmatprep.subr.mxu0 0.0
    %1645 = vmatpush1.msra.mxu0 0.0
    %1646 = vmatprep.subr.mxu0 0.0
    %1647 = vmatpush1.msra.mxu0 0.0
    %1648 = vmatprep.subr.mxu0 0.0
    %1649 = vmatpush1.msra.mxu0 0.0
    %1650 = vmatprep.subr.mxu0 0.0
    %1651 = vmatpush1.msra.mxu0 0.0
    %1652 = vmatprep.subr.mxu0 0.0
    %1653 = vmatpush1.msra.mxu0 0.0
    %1654 = vmatprep.subr.mxu0 0.0
    %1655 = vmatpush1.msra.mxu0 0.0
    %1656 = vmatprep.subr.mxu0 0.0
    %1657 = vmatpush1.msra.mxu0 0.0
    %1658 = vmatprep.subr.mxu0 0.0
    %1659 = vmatpush1.msra.mxu0 0.0
    %1660 = vmatprep.subr.mxu0 0.0
    %1661 = vmatpush1.msra.mxu0 0.0
    %1662 = vmatprep.subr.mxu0 0.0
    %1663 = vmatpush1.msra.mxu0 0.0
    %1664 = vmatprep.subr.mxu0 0.0
    %1665 = vmatpush1.msra.mxu0 %v1162
    %1666 = vmatprep.subr.mxu0 0.0
    %1667 = vmatpush1.msra.mxu0 %v1161
    %1668 = vmatprep.subr.mxu0 0.0
    %1669 = vmatpush2.msra.mxu0 0.0
    %1670 = vmatprep.subr.mxu0 0.0
    %1671 = vmatpush2.msra.mxu0 0.0
    %1672 = vmatprep.subr.mxu0 0.0
    %1673 = vmatpush2.msra.mxu0 0.0
    %1674 = vmatprep.subr.mxu0 0.0
    %1675 = vmatpush2.msra.mxu0 0.0
    %1676 = vmatprep.subr.mxu0 0.0
    %1677 = vmatpush2.msra.mxu0 0.0
    %1678 = vmatprep.subr.mxu0 0.0
    %1679 = vmatpush2.msra.mxu0 0.0
    %1680 = vmatprep.subr.mxu0 0.0
    %1681 = vmatpush2.msra.mxu0 0.0
    %1682 = vmatprep.subr.mxu0 0.0
    %1683 = vmatpush2.msra.mxu0 0.0
    %1684 = vmatprep.subr.mxu0 0.0
    %1685 = vmatpush2.msra.mxu0 0.0
    %1686 = vmatprep.subr.mxu0 0.0
    %1687 = vmatpush2.msra.mxu0 0.0
    %1688 = vmatprep.subr.mxu0 0.0
    %1689 = vmatpush2.msra.mxu0 0.0
    %1690 = vmatprep.subr.mxu0 0.0
    %1691 = vmatpush2.msra.mxu0 0.0
    %1692 = vmatprep.subr.mxu0 0.0
    %1693 = vmatpush2.msra.mxu0 0.0
    %1694 = vmatprep.subr.mxu0 0.0
    %1695 = vmatpush2.msra.mxu0 0.0
    %1696 = vmatprep.subr.mxu0 0.0
    %1697 = vmatpush2.msra.mxu0 0.0
    %1698 = vmatprep.subr.mxu0 0.0
    %1699 = vmatpush2.msra.mxu0 0.0
    %1700 = vmatprep.mubr.f32.mxu0 0.0
    %1701 = vmatmul.mubr.f32.gmra.mxu0 %v1634
    %v1702 = vpop.f32.mrf.mxu0
    %v1703 = vadd.f32 0.0, %v1702
    %v1704 = vpop.f32.mrf.mxu0
    %1705 = vdwg.mxu0
    %v1707 = vsel %vm570, %v893, 0
    %1709 = vmatprep.subr.mxu0 0.0
    %1710 = vmatpush1.msra.mxu0 0.0
    %1711 = vmatprep.subr.mxu0 0.0
    %1712 = vmatpush1.msra.mxu0 0.0
    %1713 = vmatprep.subr.mxu0 0.0
    %1714 = vmatpush1.msra.mxu0 0.0
    %1715 = vmatprep.subr.mxu0 0.0
    %1716 = vmatpush1.msra.mxu0 0.0
    %1717 = vmatprep.subr.mxu0 0.0
    %1718 = vmatpush1.msra.mxu0 0.0
    %1719 = vmatprep.subr.mxu0 0.0
    %1720 = vmatpush1.msra.mxu0 0.0
    %1721 = vmatprep.subr.mxu0 0.0
    %1722 = vmatpush1.msra.mxu0 0.0
    %1723 = vmatprep.subr.mxu0 0.0
    %1724 = vmatpush1.msra.mxu0 0.0
    %1725 = vmatprep.subr.mxu0 0.0
    %1726 = vmatpush1.msra.mxu0 0.0
    %1727 = vmatprep.subr.mxu0 0.0
    %1728 = vmatpush1.msra.mxu0 0.0
    %1729 = vmatprep.subr.mxu0 0.0
    %1730 = vmatpush1.msra.mxu0 0.0
    %1731 = vmatprep.subr.mxu0 0.0
    %1732 = vmatpush1.msra.mxu0 0.0
    %1733 = vmatprep.subr.mxu0 0.0
    %1734 = vmatpush1.msra.mxu0 0.0
    %1735 = vmatprep.subr.mxu0 0.0
    %1736 = vmatpush1.msra.mxu0 0.0
    %1737 = vmatprep.subr.mxu0 0.0
    %1738 = vmatpush1.msra.mxu0 %v569
    %1739 = vmatprep.subr.mxu0 0.0
    %1740 = vmatpush1.msra.mxu0 %v568
    %1741 = vmatprep.subr.mxu0 0.0
    %1742 = vmatpush2.msra.mxu0 0.0
    %1743 = vmatprep.subr.mxu0 0.0
    %1744 = vmatpush2.msra.mxu0 0.0
    %1745 = vmatprep.subr.mxu0 0.0
    %1746 = vmatpush2.msra.mxu0 0.0
    %1747 = vmatprep.subr.mxu0 0.0
    %1748 = vmatpush2.msra.mxu0 0.0
    %1749 = vmatprep.subr.mxu0 0.0
    %1750 = vmatpush2.msra.mxu0 0.0
    %1751 = vmatprep.subr.mxu0 0.0
    %1752 = vmatpush2.msra.mxu0 0.0
    %1753 = vmatprep.subr.mxu0 0.0
    %1754 = vmatpush2.msra.mxu0 0.0
    %1755 = vmatprep.subr.mxu0 0.0
    %1756 = vmatpush2.msra.mxu0 0.0
    %1757 = vmatprep.subr.mxu0 0.0
    %1758 = vmatpush2.msra.mxu0 0.0
    %1759 = vmatprep.subr.mxu0 0.0
    %1760 = vmatpush2.msra.mxu0 0.0
    %1761 = vmatprep.subr.mxu0 0.0
    %1762 = vmatpush2.msra.mxu0 0.0
    %1763 = vmatprep.subr.mxu0 0.0
    %1764 = vmatpush2.msra.mxu0 0.0
    %1765 = vmatprep.subr.mxu0 0.0
    %1766 = vmatpush2.msra.mxu0 0.0
    %1767 = vmatprep.subr.mxu0 0.0
    %1768 = vmatpush2.msra.mxu0 0.0
    %1769 = vmatprep.subr.mxu0 0.0
    %1770 = vmatpush2.msra.mxu0 0.0
    %1771 = vmatprep.subr.mxu0 0.0
    %1772 = vmatpush2.msra.mxu0 0.0
    %1773 = vmatprep.mubr.f32.mxu0 0.0
    %1774 = vmatmul.mubr.f32.gmra.mxu0 %v1707
    %v1775 = vpop.f32.mrf.mxu0
    %v1776 = vadd.f32 %v1703, %v1775
    %v1777 = vpop.f32.mrf.mxu0
    %1778 = vdwg.mxu0
    %v1780 = vlaneseq
    %v1781 = vshrl.u32 %v1780, 7
    %v1782 = vsub.s32 0, %v1781
    %v1783 = vrot.slane %v232, %v1782
    %v1785 = vadd.f32 %v1468, %v1783
    %v1786 = vadd.f32 %v1776, %v1783
    %v1787 = vadd.f32 %v228, %v1785
    %v1788 = vadd.f32 %v229, %v1786
    %v1789 = vsel %vm186, %v1787, 0.0
    %1790 = vadd.xlane.f32.xlu0 %v1789
    %v1791 = vpop.xlane.xlu0 %1790
    %v1792 = vsel %vm186, %v1788, 0.0
    %1793 = vadd.xlane.f32.xlu0 %v1792
    %v1794 = vpop.xlane.xlu0 %1793
    %v1795 = vmul.f32 %v1791, %v193
    %v1796 = vmul.f32 %v1794, %v193
    %v1797 = vsub.f32 %v1787, %v1795
    %v1798 = vsub.f32 %v1788, %v1796
    %v1799 = vmul.f32 %v1797, %v1797
    %v1800 = vmul.f32 %v1798, %v1798
    %v1801 = vsel %vm186, %v1799, 0.0
    %1802 = vadd.xlane.f32.xlu0 %v1801
    %v1803 = vpop.xlane.xlu0 %1802
    %v1804 = vsel %vm186, %v1800, 0.0
    %1805 = vadd.xlane.f32.xlu0 %v1804
    %v1806 = vpop.xlane.xlu0 %1805
    %v1807 = vmul.f32 %v1803, %v193
    %v1808 = vmul.f32 %v1806, %v193
    %v1809 = vadd.f32 %v1807, 1e-05
    %v1810 = vadd.f32 %v1808, 1e-05
    %v1811 = vrsqrt.pop %v1809
    %v1812 = vrsqrt.pop %v1810
    %v1813 = vmul.f32 %v1797, %v1811
    %v1814 = vmul.f32 %v1798, %v1812
    %v1816 = vlaneseq
    %v1817 = vshrl.u32 %v1816, 7
    %v1818 = vsub.s32 0, %v1817
    %v1819 = vrot.slane %v233, %v1818
    %v1821 = vmul.f32 %v1813, %v1819
    %v1822 = vmul.f32 %v1814, %v1819
    %v1824 = vlaneseq
    %v1825 = vshrl.u32 %v1824, 7
    %v1826 = vsub.s32 0, %v1825
    %v1827 = vrot.slane %v234, %v1826
    %v1829 = vadd.f32 %v1821, %v1827
    %v1830 = vadd.f32 %v1822, %v1827
    %v1832 = vlaneseq
    %v1833 = vshrl.u32 %v1832, 7
    %v1834 = vsub.s32 0, %v1833
    %v1835 = vrot.slane %v239, %v1834
    %v1838 = vsel %vm186, %v1829, 0
    %v1841 = vsel %vm186, %v1830, 0
    %1843 = vmatprep.subr.mxu0 0.0
    %1844 = vmatpush1.msra.mxu0 0.0
    %1845 = vmatprep.subr.mxu0 0.0
    %1846 = vmatpush1.msra.mxu0 0.0
    %1847 = vmatprep.subr.mxu0 0.0
    %1848 = vmatpush1.msra.mxu0 0.0
    %1849 = vmatprep.subr.mxu0 0.0
    %1850 = vmatpush1.msra.mxu0 0.0
    %1851 = vmatprep.subr.mxu0 0.0
    %1852 = vmatpush1.msra.mxu0 0.0
    %1853 = vmatprep.subr.mxu0 0.0
    %1854 = vmatpush1.msra.mxu0 0.0
    %1855 = vmatprep.subr.mxu0 0.0
    %1856 = vmatpush1.msra.mxu0 0.0
    %1857 = vmatprep.subr.mxu0 0.0
    %1858 = vmatpush1.msra.mxu0 0.0
    %1859 = vmatprep.subr.mxu0 0.0
    %1860 = vmatpush1.msra.mxu0 0.0
    %1861 = vmatprep.subr.mxu0 0.0
    %1862 = vmatpush1.msra.mxu0 0.0
    %1863 = vmatprep.subr.mxu0 0.0
    %1864 = vmatpush1.msra.mxu0 0.0
    %1865 = vmatprep.subr.mxu0 0.0
    %1866 = vmatpush1.msra.mxu0 0.0
    %1867 = vmatprep.subr.mxu0 0.0
    %1868 = vmatpush1.msra.mxu0 %v238
    %1869 = vmatprep.subr.mxu0 0.0
    %1870 = vmatpush1.msra.mxu0 %v237
    %1871 = vmatprep.subr.mxu0 0.0
    %1872 = vmatpush1.msra.mxu0 %v236
    %1873 = vmatprep.subr.mxu0 0.0
    %1874 = vmatpush1.msra.mxu0 %v235
    %1875 = vmatprep.subr.mxu0 0.0
    %1876 = vmatpush2.msra.mxu0 0.0
    %1877 = vmatprep.subr.mxu0 0.0
    %1878 = vmatpush2.msra.mxu0 0.0
    %1879 = vmatprep.subr.mxu0 0.0
    %1880 = vmatpush2.msra.mxu0 0.0
    %1881 = vmatprep.subr.mxu0 0.0
    %1882 = vmatpush2.msra.mxu0 0.0
    %1883 = vmatprep.subr.mxu0 0.0
    %1884 = vmatpush2.msra.mxu0 0.0
    %1885 = vmatprep.subr.mxu0 0.0
    %1886 = vmatpush2.msra.mxu0 0.0
    %1887 = vmatprep.subr.mxu0 0.0
    %1888 = vmatpush2.msra.mxu0 0.0
    %1889 = vmatprep.subr.mxu0 0.0
    %1890 = vmatpush2.msra.mxu0 0.0
    %1891 = vmatprep.subr.mxu0 0.0
    %1892 = vmatpush2.msra.mxu0 0.0
    %1893 = vmatprep.subr.mxu0 0.0
    %1894 = vmatpush2.msra.mxu0 0.0
    %1895 = vmatprep.subr.mxu0 0.0
    %1896 = vmatpush2.msra.mxu0 0.0
    %1897 = vmatprep.subr.mxu0 0.0
    %1898 = vmatpush2.msra.mxu0 0.0
    %1899 = vmatprep.subr.mxu0 0.0
    %1900 = vmatpush2.msra.mxu0 0.0
    %1901 = vmatprep.subr.mxu0 0.0
    %1902 = vmatpush2.msra.mxu0 0.0
    %1903 = vmatprep.subr.mxu0 0.0
    %1904 = vmatpush2.msra.mxu0 0.0
    %1905 = vmatprep.subr.mxu0 0.0
    %1906 = vmatpush2.msra.mxu0 0.0
    %1907 = vmatprep.mubr.f32.mxu0 0.0
    %1908 = vmatmul.mubr.f32.gmra.mxu0 %v1838
    %v1909 = vpop.f32.mrf.mxu0
    %v1910 = vadd.f32 %v1835, %v1909
    %v1911 = vpop.f32.mrf.mxu0
    %1912 = vmatprep.mubr.f32.mxu0 0.0
    %1913 = vmatmul.mubr.f32.gmra.mxu0 %v1841
    %v1914 = vpop.f32.mrf.mxu0
    %v1915 = vadd.f32 %v1835, %v1914
    %v1916 = vpop.f32.mrf.mxu0
    %1917 = vdwg.mxu0
    %v1918 = vmul.f32 %v1910, 0.5
    %v1919 = vmul.f32 %v1915, 0.5
    %v1920 = vmul.f32 %v1910, 0.044715
    %v1921 = vmul.f32 %v1915, 0.044715
    %v1922 = vmul.f32 %v1920, %v1910
    %v1923 = vmul.f32 %v1921, %v1915
    %v1924 = vmul.f32 %v1922, %v1910
    %v1925 = vmul.f32 %v1923, %v1915
    %v1926 = vadd.f32 %v1910, %v1924
    %v1927 = vadd.f32 %v1915, %v1925
    %v1928 = vmul.f32 %v1926, 0.7978846
    %v1929 = vmul.f32 %v1927, 0.7978846
    %v1930 = vtanh.pop %v1928
    %v1931 = vtanh.pop %v1929
    %v1932 = vadd.f32 %v1930, 1.0
    %v1933 = vadd.f32 %v1931, 1.0
    %v1934 = vmul.f32 %v1918, %v1932
    %v1935 = vmul.f32 %v1919, %v1933
    %v1937 = vlaneseq
    %v1938 = vshrl.u32 %v1937, 7
    %v1939 = vsub.s32 0, %v1938
    %v1940 = vrot.slane %v256, %v1939
    %1942 = vmatprep.subr.mxu0 0.0
    %1943 = vmatpush1.msra.mxu0 %v255
    %1944 = vmatprep.subr.mxu0 0.0
    %1945 = vmatpush1.msra.mxu0 %v254
    %1946 = vmatprep.subr.mxu0 0.0
    %1947 = vmatpush1.msra.mxu0 %v253
    %1948 = vmatprep.subr.mxu0 0.0
    %1949 = vmatpush1.msra.mxu0 %v252
    %1950 = vmatprep.subr.mxu0 0.0
    %1951 = vmatpush1.msra.mxu0 %v251
    %1952 = vmatprep.subr.mxu0 0.0
    %1953 = vmatpush1.msra.mxu0 %v250
    %1954 = vmatprep.subr.mxu0 0.0
    %1955 = vmatpush1.msra.mxu0 %v249
    %1956 = vmatprep.subr.mxu0 0.0
    %1957 = vmatpush1.msra.mxu0 %v248
    %1958 = vmatprep.subr.mxu0 0.0
    %1959 = vmatpush1.msra.mxu0 %v247
    %1960 = vmatprep.subr.mxu0 0.0
    %1961 = vmatpush1.msra.mxu0 %v246
    %1962 = vmatprep.subr.mxu0 0.0
    %1963 = vmatpush1.msra.mxu0 %v245
    %1964 = vmatprep.subr.mxu0 0.0
    %1965 = vmatpush1.msra.mxu0 %v244
    %1966 = vmatprep.subr.mxu0 0.0
    %1967 = vmatpush1.msra.mxu0 %v243
    %1968 = vmatprep.subr.mxu0 0.0
    %1969 = vmatpush1.msra.mxu0 %v242
    %1970 = vmatprep.subr.mxu0 0.0
    %1971 = vmatpush1.msra.mxu0 %v241
    %1972 = vmatprep.subr.mxu0 0.0
    %1973 = vmatpush1.msra.mxu0 %v240
    %1974 = vmatprep.subr.mxu0 0.0
    %1975 = vmatpush2.msra.mxu0 0.0
    %1976 = vmatprep.subr.mxu0 0.0
    %1977 = vmatpush2.msra.mxu0 0.0
    %1978 = vmatprep.subr.mxu0 0.0
    %1979 = vmatpush2.msra.mxu0 0.0
    %1980 = vmatprep.subr.mxu0 0.0
    %1981 = vmatpush2.msra.mxu0 0.0
    %1982 = vmatprep.subr.mxu0 0.0
    %1983 = vmatpush2.msra.mxu0 0.0
    %1984 = vmatprep.subr.mxu0 0.0
    %1985 = vmatpush2.msra.mxu0 0.0
    %1986 = vmatprep.subr.mxu0 0.0
    %1987 = vmatpush2.msra.mxu0 0.0
    %1988 = vmatprep.subr.mxu0 0.0
    %1989 = vmatpush2.msra.mxu0 0.0
    %1990 = vmatprep.subr.mxu0 0.0
    %1991 = vmatpush2.msra.mxu0 0.0
    %1992 = vmatprep.subr.mxu0 0.0
    %1993 = vmatpush2.msra.mxu0 0.0
    %1994 = vmatprep.subr.mxu0 0.0
    %1995 = vmatpush2.msra.mxu0 0.0
    %1996 = vmatprep.subr.mxu0 0.0
    %1997 = vmatpush2.msra.mxu0 0.0
    %1998 = vmatprep.subr.mxu0 0.0
    %1999 = vmatpush2.msra.mxu0 0.0
    %2000 = vmatprep.subr.mxu0 0.0
    %2001 = vmatpush2.msra.mxu0 0.0
    %2002 = vmatprep.subr.mxu0 0.0
    %2003 = vmatpush2.msra.mxu0 0.0
    %2004 = vmatprep.subr.mxu0 0.0
    %2005 = vmatpush2.msra.mxu0 0.0
    %2006 = vmatprep.mubr.f32.mxu0 0.0
    %2007 = vmatmul.mubr.f32.gmra.mxu0 %v1934
    %v2008 = vpop.f32.mrf.mxu0
    %v2009 = vadd.f32 %v1940, %v2008
    %v2010 = vpop.f32.mrf.mxu0
    %2011 = vmatprep.mubr.f32.mxu0 0.0
    %2012 = vmatmul.mubr.f32.gmra.mxu0 %v1935
    %v2013 = vpop.f32.mrf.mxu0
    %v2014 = vadd.f32 %v1940, %v2013
    %v2015 = vpop.f32.mrf.mxu0
    %2016 = vdwg.mxu0
    %v2017 = vadd.f32 %v1787, %v2009
    %v2018 = vadd.f32 %v1788, %v2014
    %v2019 = vld [vmem:[%s21] sm:$0x3]
    %v2021 = vsel %vm570, %v2019, 0
    %2023 = vmatprep.subr.mxu0 0.0
    %2024 = vmatpush1.msra.mxu0 0.0
    %2025 = vmatprep.subr.mxu0 0.0
    %2026 = vmatpush1.msra.mxu0 0.0
    %2027 = vmatprep.subr.mxu0 0.0
    %2028 = vmatpush1.msra.mxu0 0.0
    %2029 = vmatprep.subr.mxu0 0.0
    %2030 = vmatpush1.msra.mxu0 0.0
    %2031 = vmatprep.subr.mxu0 0.0
    %2032 = vmatpush1.msra.mxu0 0.0
    %2033 = vmatprep.subr.mxu0 0.0
    %2034 = vmatpush1.msra.mxu0 0.0
    %2035 = vmatprep.subr.mxu0 0.0
    %2036 = vmatpush1.msra.mxu0 0.0
    %2037 = vmatprep.subr.mxu0 0.0
    %2038 = vmatpush1.msra.mxu0 0.0
    %2039 = vmatprep.subr.mxu0 0.0
    %2040 = vmatpush1.msra.mxu0 0.0
    %2041 = vmatprep.subr.mxu0 0.0
    %2042 = vmatpush1.msra.mxu0 0.0
    %2043 = vmatprep.subr.mxu0 0.0
    %2044 = vmatpush1.msra.mxu0 0.0
    %2045 = vmatprep.subr.mxu0 0.0
    %2046 = vmatpush1.msra.mxu0 0.0
    %2047 = vmatprep.subr.mxu0 0.0
    %2048 = vmatpush1.msra.mxu0 0.0
    %2049 = vmatprep.subr.mxu0 0.0
    %2050 = vmatpush1.msra.mxu0 0.0
    %2051 = vmatprep.subr.mxu0 0.0
    %2052 = vmatpush1.msra.mxu0 %v2018
    %2053 = vmatprep.subr.mxu0 0.0
    %2054 = vmatpush1.msra.mxu0 %v2017
    %2055 = vmatprep.subr.mxu0 0.0
    %2056 = vmatpush2.msra.mxu0 0.0
    %2057 = vmatprep.subr.mxu0 0.0
    %2058 = vmatpush2.msra.mxu0 0.0
    %2059 = vmatprep.subr.mxu0 0.0
    %2060 = vmatpush2.msra.mxu0 0.0
    %2061 = vmatprep.subr.mxu0 0.0
    %2062 = vmatpush2.msra.mxu0 0.0
    %2063 = vmatprep.subr.mxu0 0.0
    %2064 = vmatpush2.msra.mxu0 0.0
    %2065 = vmatprep.subr.mxu0 0.0
    %2066 = vmatpush2.msra.mxu0 0.0
    %2067 = vmatprep.subr.mxu0 0.0
    %2068 = vmatpush2.msra.mxu0 0.0
    %2069 = vmatprep.subr.mxu0 0.0
    %2070 = vmatpush2.msra.mxu0 0.0
    %2071 = vmatprep.subr.mxu0 0.0
    %2072 = vmatpush2.msra.mxu0 0.0
    %2073 = vmatprep.subr.mxu0 0.0
    %2074 = vmatpush2.msra.mxu0 0.0
    %2075 = vmatprep.subr.mxu0 0.0
    %2076 = vmatpush2.msra.mxu0 0.0
    %2077 = vmatprep.subr.mxu0 0.0
    %2078 = vmatpush2.msra.mxu0 0.0
    %2079 = vmatprep.subr.mxu0 0.0
    %2080 = vmatpush2.msra.mxu0 0.0
    %2081 = vmatprep.subr.mxu0 0.0
    %2082 = vmatpush2.msra.mxu0 0.0
    %2083 = vmatprep.subr.mxu0 0.0
    %2084 = vmatpush2.msra.mxu0 0.0
    %2085 = vmatprep.subr.mxu0 0.0
    %2086 = vmatpush2.msra.mxu0 0.0
    %2087 = vmatprep.mubr.f32.mxu0 0.0
    %2088 = vmatmul.mubr.f32.gmra.mxu0 %v2021
    %v2089 = vpop.f32.mrf.mxu0
    %v2090 = vadd.f32 0.0, %v2089
    %v2091 = vpop.f32.mrf.mxu0
    %2092 = vdwg.mxu0
    %v2093 = vld [vmem:[%s17] sm:$0x1]
    %v2094 = vld [vmem:[%s18] sm:$0x1]
    %vm2095 = vcmask 254976
    %v2096 = vsel %vm2095, %v2090, 0.0
    %2097 = vadd.xlane.f32.xlu0 %v2096
    %v2098 = vpop.xlane.xlu0 %2097
    %v2099 = vmul.f32 %v2098, %v193
    %v2100 = vsub.f32 %v2090, %v2099
    %v2101 = vmul.f32 %v2100, %v2100
    %v2102 = vsel %vm2095, %v2101, 0.0
    %2103 = vadd.xlane.f32.xlu0 %v2102
    %v2104 = vpop.xlane.xlu0 %2103
    %v2105 = vmul.f32 %v2104, %v193
    %v2106 = vadd.f32 %v2105, 1e-05
    %v2107 = vrsqrt.pop %v2106
    %v2108 = vmul.f32 %v2100, %v2107
    %v2110 = vlaneseq
    %v2111 = vshrl.u32 %v2110, 7
    %v2112 = vsub.s32 0, %v2111
    %v2113 = vrot.slane %v2093, %v2112
    %v2115 = vmul.f32 %v2108, %v2113
    %v2117 = vlaneseq
    %v2118 = vshrl.u32 %v2117, 7
    %v2119 = vsub.s32 0, %v2118
    %v2120 = vrot.slane %v2094, %v2119
    %v2122 = vadd.f32 %v2115, %v2120
    %v2123 = vld [vmem:[%s19] sm:$0xff]
    %v2124 = vld [vmem:[%s19 + $0x8] sm:$0xff]
    %v2125 = vld [vmem:[%s19 + $0x10] sm:$0xff]
    %v2126 = vld [vmem:[%s19 + $0x18] sm:$0xff]
    %v2128 = vsel %vm186, %v2122, 0
    %2130 = vmatprep.subr.mxu0 0.0
    %2131 = vmatpush1.msra.mxu0 0.0
    %2132 = vmatprep.subr.mxu0 0.0
    %2133 = vmatpush1.msra.mxu0 0.0
    %2134 = vmatprep.subr.mxu0 0.0
    %2135 = vmatpush1.msra.mxu0 0.0
    %2136 = vmatprep.subr.mxu0 0.0
    %2137 = vmatpush1.msra.mxu0 0.0
    %2138 = vmatprep.subr.mxu0 0.0
    %2139 = vmatpush1.msra.mxu0 0.0
    %2140 = vmatprep.subr.mxu0 0.0
    %2141 = vmatpush1.msra.mxu0 0.0
    %2142 = vmatprep.subr.mxu0 0.0
    %2143 = vmatpush1.msra.mxu0 0.0
    %2144 = vmatprep.subr.mxu0 0.0
    %2145 = vmatpush1.msra.mxu0 0.0
    %2146 = vmatprep.subr.mxu0 0.0
    %2147 = vmatpush1.msra.mxu0 0.0
    %2148 = vmatprep.subr.mxu0 0.0
    %2149 = vmatpush1.msra.mxu0 0.0
    %2150 = vmatprep.subr.mxu0 0.0
    %2151 = vmatpush1.msra.mxu0 0.0
    %2152 = vmatprep.subr.mxu0 0.0
    %2153 = vmatpush1.msra.mxu0 0.0
    %2154 = vmatprep.subr.mxu0 0.0
    %2155 = vmatpush1.msra.mxu0 %v2126
    %2156 = vmatprep.subr.mxu0 0.0
    %2157 = vmatpush1.msra.mxu0 %v2125
    %2158 = vmatprep.subr.mxu0 0.0
    %2159 = vmatpush1.msra.mxu0 %v2124
    %2160 = vmatprep.subr.mxu0 0.0
    %2161 = vmatpush1.msra.mxu0 %v2123
    %2162 = vmatprep.subr.mxu0 0.0
    %2163 = vmatpush2.msra.mxu0 0.0
    %2164 = vmatprep.subr.mxu0 0.0
    %2165 = vmatpush2.msra.mxu0 0.0
    %2166 = vmatprep.subr.mxu0 0.0
    %2167 = vmatpush2.msra.mxu0 0.0
    %2168 = vmatprep.subr.mxu0 0.0
    %2169 = vmatpush2.msra.mxu0 0.0
    %2170 = vmatprep.subr.mxu0 0.0
    %2171 = vmatpush2.msra.mxu0 0.0
    %2172 = vmatprep.subr.mxu0 0.0
    %2173 = vmatpush2.msra.mxu0 0.0
    %2174 = vmatprep.subr.mxu0 0.0
    %2175 = vmatpush2.msra.mxu0 0.0
    %2176 = vmatprep.subr.mxu0 0.0
    %2177 = vmatpush2.msra.mxu0 0.0
    %2178 = vmatprep.subr.mxu0 0.0
    %2179 = vmatpush2.msra.mxu0 0.0
    %2180 = vmatprep.subr.mxu0 0.0
    %2181 = vmatpush2.msra.mxu0 0.0
    %2182 = vmatprep.subr.mxu0 0.0
    %2183 = vmatpush2.msra.mxu0 0.0
    %2184 = vmatprep.subr.mxu0 0.0
    %2185 = vmatpush2.msra.mxu0 0.0
    %2186 = vmatprep.subr.mxu0 0.0
    %2187 = vmatpush2.msra.mxu0 0.0
    %2188 = vmatprep.subr.mxu0 0.0
    %2189 = vmatpush2.msra.mxu0 0.0
    %2190 = vmatprep.subr.mxu0 0.0
    %2191 = vmatpush2.msra.mxu0 0.0
    %2192 = vmatprep.subr.mxu0 0.0
    %2193 = vmatpush2.msra.mxu0 0.0
    %2194 = vmatprep.mubr.f32.mxu0 0.0
    %2195 = vmatmul.mubr.f32.gmra.mxu0 %v2128
    %v2196 = vpop.f32.mrf.mxu0
    %v2197 = vadd.f32 0.0, %v2196
    %v2198 = vpop.f32.mrf.mxu0
    %2199 = vdwg.mxu0
    %2200 = vst.msk [vmem:[#allocation2] sm:$0x3] %vm2095, %v2197
    // Predicated region
    $region90: #{_eval_forward.1} parent=1 // pred_check
      _
    $region91: #{_eval_forward.1} parent=1 // pred_check_branch
      %2202 = sbr.rel (0) target = $region93
    $region92: #{_eval_forward.1} parent=1 // pred_region
      %s2204 = ssub.s32 32, 32
      %2205 = vsyncadd [#allocation3], %s2204
      %s2207 = sshll.u32 [#allocation2], 4
      %s2208 = int_to_ptr.vmem [resolvable:$true] %s2207
      %2210 = dma.vmem_to_hbm [thread:$0]  %s2208, 32, %s22, [#allocation3]
    $region93: #{_eval_forward.1} parent=1 // pred_fallthru
      _
    // Predicated region
    $region94: #{_eval_forward.1} parent=1 // pred_check
      _
    $region95: #{_eval_forward.1} parent=1 // pred_check_branch
      %2212 = sbr.rel (0) target = $region97
    $region96: #{_eval_forward.1} parent=1 // pred_region
      %2213 = dma.done [#allocation3], 32
    $region97: #{_eval_forward.1} parent=1 // pred_fallthru
      _
    %2214 = vsyncpa [#allocation3], 1

</llo_original>
